<compile_context>
chip_gen: v7x
topology: tpu7x:2x2x1
jax: 0.10.0
libtpu: 0.0.40
codegen_flags: <defaults>
</compile_context>

<pallas_src>
import functools

import jax
import jax.numpy as jnp
from jax.experimental import pallas as pl
from jax.experimental.pallas import tpu as pltpu

_BN_EPS = 1e-5
_VMEM_LIMIT = 32 * 1024 * 1024


def _pick_tile_rows(hw):
    """Largest divisor of hw that is a multiple of 8 and <= 512 (fallback: hw)."""
    best = hw
    for tr in range(8, min(hw, 512) + 1, 8):
        if hw % tr == 0:
            best = tr
    return best


# ---------------------------- pass 1: conv + stats ----------------------------
def conv_stats_kernel(xcol_ref, wk_ref, y_ref, psum_ref, psumsq_ref):
    # Single MXU matmul, K = 9*Cin (bf16 in, f32 accumulate).
    y = jnp.dot(xcol_ref[0], wk_ref[...], preferred_element_type=jnp.float32)
    y_ref[0] = y.astype(y_ref.dtype)                     # bf16 slab to HBM
    psum_ref[0] = jnp.sum(y, axis=0, keepdims=True)      # f32 BN partials
    psumsq_ref[0] = jnp.sum(y * y, axis=0, keepdims=True)


# ------------------------ pass 2: finalize BN scale/shift ---------------------
def bn_finalize_kernel(psum_ref, psumsq_ref, gamma_ref, beta_ref,
                       scale_ref, shift_ref, *, n_total):
    s1 = jnp.sum(psum_ref[...], axis=(0, 1), keepdims=True)    # (1, 1, Cout)
    s2 = jnp.sum(psumsq_ref[...], axis=(0, 1), keepdims=True)
    inv_n = 1.0 / n_total
    mean = s1 * inv_n
    var = s2 * inv_n - mean * mean                              # biased (training BN)
    scale = gamma_ref[...] * jax.lax.rsqrt(var + _BN_EPS)
    shift = beta_ref[...] - mean * scale
    scale_ref[...] = scale
    shift_ref[...] = shift


# -------------------------- pass 3: BN+ReLU + SE pool -------------------------
def bn_pool_kernel(y_ref, scale_ref, shift_ref, ppool_ref):
    ybn = jnp.maximum(y_ref[0].astype(jnp.float32) * scale_ref[0] + shift_ref[0], 0.0)
    ppool_ref[0] = jnp.sum(ybn, axis=0, keepdims=True)          # per-tile SE partial


# ------------------------------ pass 4: SE gate -------------------------------
def se_gate_kernel(ppool_ref, w1_ref, w2_ref, gate_ref, *, inv_hw):
    s = jnp.sum(ppool_ref[0], axis=0, keepdims=True) * inv_hw   # (1, Cout) spatial mean
    h1 = jnp.maximum(jnp.dot(s, w1_ref[...], preferred_element_type=jnp.float32), 0.0)
    gate_ref[0] = jax.nn.sigmoid(
        jnp.dot(h1, w2_ref[...], preferred_element_type=jnp.float32))


# ----------------------- pass 5: BN+ReLU recompute + gate ---------------------
def apply_kernel(y_ref, scale_ref, shift_ref, gate_ref, o_ref):
    ybn = jnp.maximum(y_ref[0].astype(jnp.float32) * scale_ref[0] + shift_ref[0], 0.0)
    o_ref[0] = (ybn * gate_ref[0]).astype(o_ref.dtype)


def conv_block_forward(x_nchw, params):
    n, c_in, h, w = x_nchw.shape
    conv_w = params["conv_w"]                       # (Cout, Cin, 3, 3) -- PyTorch OIHW
    c_out = conv_w.shape[0]
    c_red = params["fc1_w"].shape[0]
    hw = h * w
    tr = _pick_tile_rows(hw)
    t = hw // tr

    # glue: NCHW -> NHWC, zero-pad by 1, fold the 9 taps into the channel dim.
    # TODO(synk): the im2col fold inflates conv-input HBM reads ~9x; an in-kernel
    # halo-tap construction (row-offset pl.ds into padded NHWC) would remove it.
    x = jnp.transpose(x_nchw, (0, 2, 3, 1)).astype(jnp.float32)
    xp = jnp.pad(x, ((0, 0), (1, 1), (1, 1), (0, 0)))
    taps = [xp[:, kh:kh + h, kw:kw + w, :] for kh in range(3) for kw in range(3)]
    xcol = jnp.concatenate(taps, axis=-1).reshape(n, hw, 9 * c_in).astype(jnp.bfloat16)
    wk = jnp.transpose(conv_w, (2, 3, 1, 0)).reshape(9 * c_in, c_out).astype(jnp.bfloat16)
    gamma = params["bn_gamma"].reshape(1, 1, c_out).astype(jnp.float32)
    beta = params["bn_beta"].reshape(1, 1, c_out).astype(jnp.float32)
    w1 = params["fc1_w"].T.astype(jnp.float32)      # (Cout, Cred); tiny -> keep f32
    w2 = params["fc2_w"].T.astype(jnp.float32)      # (Cred, Cout)

    cparams2d = pltpu.CompilerParams(
        dimension_semantics=("parallel", "parallel"), vmem_limit_bytes=_VMEM_LIMIT)
    cparams1d = pltpu.CompilerParams(
        dimension_semantics=("parallel",), vmem_limit_bytes=_VMEM_LIMIT)

    # ---- pass 1: conv (single bf16 MXU matmul) + per-tile channel sum / sumsq ----
    y_conv, psum, psumsq = pl.pallas_call(
        conv_stats_kernel,
        out_shape=(jax.ShapeDtypeStruct((n, hw, c_out), jnp.bfloat16),
                   jax.ShapeDtypeStruct((n, t, c_out), jnp.float32),
                   jax.ShapeDtypeStruct((n, t, c_out), jnp.float32)),
        grid_spec=pltpu.PrefetchScalarGridSpec(
            num_scalar_prefetch=0,
            grid=(n, t),
            in_specs=[
                pl.BlockSpec((1, tr, 9 * c_in), lambda ni, ti: (ni, ti, 0)),
                pl.BlockSpec((9 * c_in, c_out), lambda ni, ti: (0, 0)),
            ],
            out_specs=[
                pl.BlockSpec((1, tr, c_out), lambda ni, ti: (ni, ti, 0)),
                pl.BlockSpec((1, 1, c_out), lambda ni, ti: (ni, ti, 0)),
                pl.BlockSpec((1, 1, c_out), lambda ni, ti: (ni, ti, 0)),
            ]),
        compiler_params=cparams2d,
    )(xcol, wk)

    # ---- pass 2: finalize training-mode BN scale/shift once (tiny, grid=(1,)) ----
    scale, shift = pl.pallas_call(
        functools.partial(bn_finalize_kernel, n_total=float(n * hw)),
        out_shape=(jax.ShapeDtypeStruct((1, 1, c_out), jnp.float32),
                   jax.ShapeDtypeStruct((1, 1, c_out), jnp.float32)),
        grid_spec=pltpu.PrefetchScalarGridSpec(
            num_scalar_prefetch=0,
            grid=(1,),
            in_specs=[
                pl.BlockSpec((n, t, c_out), lambda i: (0, 0, 0)),
                pl.BlockSpec((n, t, c_out), lambda i: (0, 0, 0)),
                pl.BlockSpec((1, 1, c_out), lambda i: (0, 0, 0)),
                pl.BlockSpec((1, 1, c_out), lambda i: (0, 0, 0)),
            ],
            out_specs=[
                pl.BlockSpec((1, 1, c_out), lambda i: (0, 0, 0)),
                pl.BlockSpec((1, 1, c_out), lambda i: (0, 0, 0)),
            ]),
        compiler_params=pltpu.CompilerParams(dimension_semantics=("arbitrary",),
                                             vmem_limit_bytes=_VMEM_LIMIT),
    )(psum, psumsq, gamma, beta)

    # ---- pass 3: BN(train) + ReLU, per-tile SE pool partial sums ----
    ppool = pl.pallas_call(
        bn_pool_kernel,
        out_shape=jax.ShapeDtypeStruct((n, t, c_out), jnp.float32),
        grid_spec=pltpu.PrefetchScalarGridSpec(
            num_scalar_prefetch=0,
            grid=(n, t),
            in_specs=[
                pl.BlockSpec((1, tr, c_out), lambda ni, ti: (ni, ti, 0)),
                pl.BlockSpec((1, 1, c_out), lambda ni, ti: (0, 0, 0)),
                pl.BlockSpec((1, 1, c_out), lambda ni, ti: (0, 0, 0)),
            ],
            out_specs=pl.BlockSpec((1, 1, c_out), lambda ni, ti: (ni, ti, 0))),
        compiler_params=cparams2d,
    )(y_conv, scale, shift)

    # ---- pass 4: SE gate per image (fc1 -> ReLU -> fc2 -> sigmoid), once ----
    gate = pl.pallas_call(
        functools.partial(se_gate_kernel, inv_hw=1.0 / hw),
        out_shape=jax.ShapeDtypeStruct((n, 1, c_out), jnp.float32),
        grid_spec=pltpu.PrefetchScalarGridSpec(
            num_scalar_prefetch=0,
            grid=(n,),
            in_specs=[
                pl.BlockSpec((1, t, c_out), lambda ni: (ni, 0, 0)),
                pl.BlockSpec((c_out, c_red), lambda ni: (0, 0)),
                pl.BlockSpec((c_red, c_out), lambda ni: (0, 0)),
            ],
            out_specs=pl.BlockSpec((1, 1, c_out), lambda ni: (ni, 0, 0))),
        compiler_params=cparams1d,
    )(ppool, w1, w2)

    # ---- pass 5: BN+ReLU recompute + per-channel gate rescale ----
    # TODO(synk): for Cout < 128 a lane-dense output repack would avoid masked vst
    # stores; skipped to keep the store layout identical to NHWC.
    out_flat = pl.pallas_call(
        apply_kernel,
        out_shape=jax.ShapeDtypeStruct((n, hw, c_out), jnp.float32),
        grid_spec=pltpu.PrefetchScalarGridSpec(
            num_scalar_prefetch=0,
            grid=(n, t),
            in_specs=[
                pl.BlockSpec((1, tr, c_out), lambda ni, ti: (ni, ti, 0)),
                pl.BlockSpec((1, 1, c_out), lambda ni, ti: (0, 0, 0)),
                pl.BlockSpec((1, 1, c_out), lambda ni, ti: (0, 0, 0)),
                pl.BlockSpec((1, 1, c_out), lambda ni, ti: (ni, 0, 0)),
            ],
            out_specs=pl.BlockSpec((1, tr, c_out), lambda ni, ti: (ni, ti, 0))),
        compiler_params=cparams2d,
    )(y_conv, scale, shift, gate)

    return out_flat.reshape(n, h, w, c_out).transpose(0, 3, 1, 2)


def conv_block_ref(x, params):
    """Pure-JAX f32 reference of ConvBlock.forward (training-mode BN)."""
    y = jax.lax.conv_general_dilated(
        x, params["conv_w"], window_strides=(1, 1), padding=((1, 1), (1, 1)),
        dimension_numbers=("NCHW", "OIHW", "NCHW"))
    mean = y.mean(axis=(0, 2, 3), keepdims=True)
    var = ((y - mean) ** 2).mean(axis=(0, 2, 3), keepdims=True)
    y = (y - mean) / jnp.sqrt(var + _BN_EPS)
    y = y * params["bn_gamma"][None, :, None, None] + params["bn_beta"][None, :, None, None]
    y = jnp.maximum(y, 0.0)
    s = y.mean(axis=(2, 3))                                  # (N, Cout)
    h1 = jnp.maximum(s @ params["fc1_w"].T, 0.0)
    g = jax.nn.sigmoid(h1 @ params["fc2_w"].T)
    return y * g[:, :, None, None]


if __name__ == "__main__":
    N, C_IN, H, W = 2, 4, 16, 16
    C_OUT, REDUCTION = 32, 16
    C_RED = C_OUT // REDUCTION

    key = jax.random.PRNGKey(0)
    kx, kw, kg, kb, k1, k2 = jax.random.split(key, 6)
    x = jax.random.normal(kx, (N, C_IN, H, W), jnp.float32)
    params = {
        "conv_w": 0.1 * jax.random.normal(kw, (C_OUT, C_IN, 3, 3), jnp.float32),
        "bn_gamma": 1.0 + 0.1 * jax.random.normal(kg, (C_OUT,), jnp.float32),
        "bn_beta": 0.1 * jax.random.normal(kb, (C_OUT,), jnp.float32),
        "fc1_w": 0.2 * jax.random.normal(k1, (C_RED, C_OUT), jnp.float32),
        "fc2_w": 0.2 * jax.random.normal(k2, (C_OUT, C_RED), jnp.float32),
    }

    fwd = jax.jit(conv_block_forward)
    out = jax.block_until_ready(fwd(x, params))
    ref = jax.block_until_ready(conv_block_ref(x, params))

    assert out.shape == (N, C_OUT, H, W), out.shape
    # bf16 MXU inputs / bf16 conv intermediate shift numerics ~1e-3 vs the f32
    # reference; accumulation, BN stats and SE math stay in f32.
    max_err = float(jnp.max(jnp.abs(out - ref)))
    assert jnp.allclose(out, ref, atol=3e-2, rtol=3e-2), max_err
    print("KERNEL_OK")
</pallas_src>

<mosaic_0001>
module attributes {stable_mosaic.version = 11 : i64} {
  func.func @conv_stats_kernel(%arg0: i32, %arg1: i32, %arg2: memref<1x256x36xbf16, #tpu.memory_space<vmem>>, %arg3: memref<36x32xbf16, #tpu.memory_space<vmem>>, %arg4: memref<1x256x32xbf16, #tpu.memory_space<vmem>>, %arg5: memref<1x1x32xf32, #tpu.memory_space<vmem>>, %arg6: memref<1x1x32xf32, #tpu.memory_space<vmem>>) attributes {dimension_semantics = [#tpu.dimension_semantics<parallel>, #tpu.dimension_semantics<parallel>], iteration_bounds = array<i64: 2, 1>, scalar_prefetch = 0 : i64, scratch_operands = 0 : i64, tpu.core_type = #tpu.core_type<tc>, window_params = [{transform_indices = @transform_0, window_bounds = array<i64: 1, 256, 36>}, {pipeline_mode = #tpu.pipeline_mode<synchronous>, transform_indices = @transform_1, window_bounds = array<i64: 36, 32>}, {transform_indices = @transform_2, window_bounds = array<i64: 1, 256, 32>}, {transform_indices = @transform_3, window_bounds = array<i64: 1, 1, 32>}, {transform_indices = @transform_4, window_bounds = array<i64: 1, 1, 32>}]} {
    %c0 = arith.constant 0 : index
    %c0_0 = arith.constant 0 : index
    %c0_1 = arith.constant 0 : index
    %0 = vector.load %arg2[%c0, %c0_0, %c0_1] : memref<1x256x36xbf16, #tpu.memory_space<vmem>>, vector<1x256x36xbf16>
    %1 = vector.shape_cast %0 : vector<1x256x36xbf16> to vector<256x36xbf16>
    %c0_2 = arith.constant 0 : index
    %c0_3 = arith.constant 0 : index
    %2 = vector.load %arg3[%c0_2, %c0_3] : memref<36x32xbf16, #tpu.memory_space<vmem>>, vector<36x32xbf16>
    %cst = arith.constant dense<0.000000e+00> : vector<256x32xf32>
    %3 = tpu.matmul %1, %2, %cst {dimension_numbers = #tpu.dot_dimension_numbers<[1], [0], [0], [1], [0, 0, 1, 1], [], []>} : vector<256x36xbf16>, vector<36x32xbf16>, vector<256x32xf32> -> vector<256x32xf32>
    %4 = arith.truncf %3 : vector<256x32xf32> to vector<256x32xbf16>
    %c0_4 = arith.constant 0 : index
    %c0_5 = arith.constant 0 : index
    %c0_6 = arith.constant 0 : index
    %5 = vector.load %arg4[%c0_4, %c0_5, %c0_6] : memref<1x256x32xbf16, #tpu.memory_space<vmem>>, vector<1x256x32xbf16>
    %6 = vector.shape_cast %5 : vector<1x256x32xbf16> to vector<256x32xbf16>
    %7 = vector.shape_cast %4 : vector<256x32xbf16> to vector<1x256x32xbf16>
    tpu.vector_store %arg4[%c0_4, %c0_5, %c0_6], %7 {strides = array<i32>} : memref<1x256x32xbf16, #tpu.memory_space<vmem>>, vector<1x256x32xbf16>,
    %cst_7 = arith.constant dense<0.000000e+00> : vector<32xf32>
    %8 = vector.multi_reduction <add>, %3, %cst_7 [0] : vector<256x32xf32> to vector<32xf32>
    %9 = vector.shape_cast %8 : vector<32xf32> to vector<1x32xf32>
    %c0_8 = arith.constant 0 : index
    %c0_9 = arith.constant 0 : index
    %c0_10 = arith.constant 0 : index
    %10 = vector.load %arg5[%c0_8, %c0_9, %c0_10] : memref<1x1x32xf32, #tpu.memory_space<vmem>>, vector<1x1x32xf32>
    %11 = vector.shape_cast %10 : vector<1x1x32xf32> to vector<1x32xf32>
    %12 = vector.shape_cast %9 : vector<1x32xf32> to vector<1x1x32xf32>
    tpu.vector_store %arg5[%c0_8, %c0_9, %c0_10], %12 {strides = array<i32>} : memref<1x1x32xf32, #tpu.memory_space<vmem>>, vector<1x1x32xf32>,
    %13 = arith.mulf %3, %3 : vector<256x32xf32>
    %cst_11 = arith.constant dense<0.000000e+00> : vector<32xf32>
    %14 = vector.multi_reduction <add>, %13, %cst_11 [0] : vector<256x32xf32> to vector<32xf32>
    %15 = vector.shape_cast %14 : vector<32xf32> to vector<1x32xf32>
    %c0_12 = arith.constant 0 : index
    %c0_13 = arith.constant 0 : index
    %c0_14 = arith.constant 0 : index
    %16 = vector.load %arg6[%c0_12, %c0_13, %c0_14] : memref<1x1x32xf32, #tpu.memory_space<vmem>>, vector<1x1x32xf32>
    %17 = vector.shape_cast %16 : vector<1x1x32xf32> to vector<1x32xf32>
    %18 = vector.shape_cast %15 : vector<1x32xf32> to vector<1x1x32xf32>
    tpu.vector_store %arg6[%c0_12, %c0_13, %c0_14], %18 {strides = array<i32>} : memref<1x1x32xf32, #tpu.memory_space<vmem>>, vector<1x1x32xf32>,
    return
  }
  func.func @transform_0(%arg0: i32, %arg1: i32) -> (i32, i32, i32) {
    %c0_i32 = arith.constant 0 : i32
    %c0_i32_0 = arith.constant 0 : i32
    return %arg0, %arg1, %c0_i32 : i32, i32, i32
  }
  func.func @transform_1(%arg0: i32, %arg1: i32) -> (i32, i32) {
    %c0_i32 = arith.constant 0 : i32
    %c0_i32_0 = arith.constant 0 : i32
    %c0_i32_1 = arith.constant 0 : i32
    return %c0_i32, %c0_i32_0 : i32, i32
  }
  func.func @transform_2(%arg0: i32, %arg1: i32) -> (i32, i32, i32) {
    %c0_i32 = arith.constant 0 : i32
    %c0_i32_0 = arith.constant 0 : i32
    return %arg0, %arg1, %c0_i32 : i32, i32, i32
  }
  func.func @transform_3(%arg0: i32, %arg1: i32) -> (i32, i32, i32) {
    %c0_i32 = arith.constant 0 : i32
    %c0_i32_0 = arith.constant 0 : i32
    return %arg0, %arg1, %c0_i32 : i32, i32, i32
  }
  func.func @transform_4(%arg0: i32, %arg1: i32) -> (i32, i32, i32) {
    %c0_i32 = arith.constant 0 : i32
    %c0_i32_0 = arith.constant 0 : i32
    return %arg0, %arg1, %c0_i32 : i32, i32, i32
  }
}

module attributes {stable_mosaic.version = 11 : i64} {
  func.func @bn_finalize_kernel(%arg0: i32, %arg1: memref<2x1x32xf32, #tpu.memory_space<vmem>>, %arg2: memref<2x1x32xf32, #tpu.memory_space<vmem>>, %arg3: memref<1x1x32xf32, #tpu.memory_space<vmem>>, %arg4: memref<1x1x32xf32, #tpu.memory_space<vmem>>, %arg5: memref<1x1x32xf32, #tpu.memory_space<vmem>>, %arg6: memref<1x1x32xf32, #tpu.memory_space<vmem>>) attributes {dimension_semantics = [#tpu.dimension_semantics<arbitrary>], iteration_bounds = array<i64: 1>, scalar_prefetch = 0 : i64, scratch_operands = 0 : i64, tpu.core_type = #tpu.core_type<tc>, window_params = [{pipeline_mode = #tpu.pipeline_mode<synchronous>, transform_indices = @transform_0, window_bounds = array<i64: 2, 1, 32>}, {pipeline_mode = #tpu.pipeline_mode<synchronous>, transform_indices = @transform_1, window_bounds = array<i64: 2, 1, 32>}, {pipeline_mode = #tpu.pipeline_mode<synchronous>, transform_indices = @transform_2, window_bounds = array<i64: 1, 1, 32>}, {pipeline_mode = #tpu.pipeline_mode<synchronous>, transform_indices = @transform_3, window_bounds = array<i64: 1, 1, 32>}, {pipeline_mode = #tpu.pipeline_mode<synchronous>, transform_indices = @transform_4, window_bounds = array<i64: 1, 1, 32>}, {pipeline_mode = #tpu.pipeline_mode<synchronous>, transform_indices = @transform_5, window_bounds = array<i64: 1, 1, 32>}]} {
    %c0 = arith.constant 0 : index
    %c0_0 = arith.constant 0 : index
    %c0_1 = arith.constant 0 : index
    %0 = vector.load %arg1[%c0, %c0_0, %c0_1] : memref<2x1x32xf32, #tpu.memory_space<vmem>>, vector<2x1x32xf32>
    %cst = arith.constant dense<0.000000e+00> : vector<32xf32>
    %1 = vector.multi_reduction <add>, %0, %cst [0, 1] : vector<2x1x32xf32> to vector<32xf32>
    %2 = vector.shape_cast %1 : vector<32xf32> to vector<1x1x32xf32>
    %c0_2 = arith.constant 0 : index
    %c0_3 = arith.constant 0 : index
    %c0_4 = arith.constant 0 : index
    %3 = vector.load %arg2[%c0_2, %c0_3, %c0_4] : memref<2x1x32xf32, #tpu.memory_space<vmem>>, vector<2x1x32xf32>
    %cst_5 = arith.constant dense<0.000000e+00> : vector<32xf32>
    %4 = vector.multi_reduction <add>, %3, %cst_5 [0, 1] : vector<2x1x32xf32> to vector<32xf32>
    %5 = vector.shape_cast %4 : vector<32xf32> to vector<1x1x32xf32>
    %cst_6 = arith.constant 0.001953125 : f32
    %6 = vector.broadcast %cst_6 : f32 to vector<1x1x32xf32>
    %7 = arith.mulf %2, %6 : vector<1x1x32xf32>
    %cst_7 = arith.constant 0.001953125 : f32
    %8 = vector.broadcast %cst_7 : f32 to vector<1x1x32xf32>
    %9 = arith.mulf %5, %8 : vector<1x1x32xf32>
    %10 = arith.mulf %7, %7 : vector<1x1x32xf32>
    %11 = arith.subf %9, %10 : vector<1x1x32xf32>
    %c0_8 = arith.constant 0 : index
    %c0_9 = arith.constant 0 : index
    %c0_10 = arith.constant 0 : index
    %12 = vector.load %arg3[%c0_8, %c0_9, %c0_10] : memref<1x1x32xf32, #tpu.memory_space<vmem>>, vector<1x1x32xf32>
    %cst_11 = arith.constant 9.99999974E-6 : f32
    %13 = vector.broadcast %cst_11 : f32 to vector<1x1x32xf32>
    %14 = arith.addf %11, %13 : vector<1x1x32xf32>
    %15 = math.rsqrt %14 : vector<1x1x32xf32>
    %16 = arith.mulf %12, %15 : vector<1x1x32xf32>
    %c0_12 = arith.constant 0 : index
    %c0_13 = arith.constant 0 : index
    %c0_14 = arith.constant 0 : index
    %17 = vector.load %arg4[%c0_12, %c0_13, %c0_14] : memref<1x1x32xf32, #tpu.memory_space<vmem>>, vector<1x1x32xf32>
    %18 = arith.mulf %7, %16 : vector<1x1x32xf32>
    %19 = arith.subf %17, %18 : vector<1x1x32xf32>
    %c0_15 = arith.constant 0 : index
    %c0_16 = arith.constant 0 : index
    %c0_17 = arith.constant 0 : index
    %20 = vector.load %arg5[%c0_15, %c0_16, %c0_17] : memref<1x1x32xf32, #tpu.memory_space<vmem>>, vector<1x1x32xf32>
    tpu.vector_store %arg5[%c0_15, %c0_16, %c0_17], %16 {strides = array<i32>} : memref<1x1x32xf32, #tpu.memory_space<vmem>>, vector<1x1x32xf32>,
    %c0_18 = arith.constant 0 : index
    %c0_19 = arith.constant 0 : index
    %c0_20 = arith.constant 0 : index
    %21 = vector.load %arg6[%c0_18, %c0_19, %c0_20] : memref<1x1x32xf32, #tpu.memory_space<vmem>>, vector<1x1x32xf32>
    tpu.vector_store %arg6[%c0_18, %c0_19, %c0_20], %19 {strides = array<i32>} : memref<1x1x32xf32, #tpu.memory_space<vmem>>, vector<1x1x32xf32>,
    return
  }
  func.func @transform_0(%arg0: i32) -> (i32, i32, i32) {
    %c0_i32 = arith.constant 0 : i32
    %c0_i32_0 = arith.constant 0 : i32
    %c0_i32_1 = arith.constant 0 : i32
    %c0_i32_2 = arith.constant 0 : i32
    return %c0_i32, %c0_i32_0, %c0_i32_1 : i32, i32, i32
  }
  func.func @transform_1(%arg0: i32) -> (i32, i32, i32) {
    %c0_i32 = arith.constant 0 : i32
    %c0_i32_0 = arith.constant 0 : i32
    %c0_i32_1 = arith.constant 0 : i32
    %c0_i32_2 = arith.constant 0 : i32
    return %c0_i32, %c0_i32_0, %c0_i32_1 : i32, i32, i32
  }
  func.func @transform_2(%arg0: i32) -> (i32, i32, i32) {
    %c0_i32 = arith.constant 0 : i32
    %c0_i32_0 = arith.constant 0 : i32
    %c0_i32_1 = arith.constant 0 : i32
    %c0_i32_2 = arith.constant 0 : i32
    return %c0_i32, %c0_i32_0, %c0_i32_1 : i32, i32, i32
  }
  func.func @transform_3(%arg0: i32) -> (i32, i32, i32) {
    %c0_i32 = arith.constant 0 : i32
    %c0_i32_0 = arith.constant 0 : i32
    %c0_i32_1 = arith.constant 0 : i32
    %c0_i32_2 = arith.constant 0 : i32
    return %c0_i32, %c0_i32_0, %c0_i32_1 : i32, i32, i32
  }
  func.func @transform_4(%arg0: i32) -> (i32, i32, i32) {
    %c0_i32 = arith.constant 0 : i32
    %c0_i32_0 = arith.constant 0 : i32
    %c0_i32_1 = arith.constant 0 : i32
    %c0_i32_2 = arith.constant 0 : i32
    return %c0_i32, %c0_i32_0, %c0_i32_1 : i32, i32, i32
  }
  func.func @transform_5(%arg0: i32) -> (i32, i32, i32) {
    %c0_i32 = arith.constant 0 : i32
    %c0_i32_0 = arith.constant 0 : i32
    %c0_i32_1 = arith.constant 0 : i32
    %c0_i32_2 = arith.constant 0 : i32
    return %c0_i32, %c0_i32_0, %c0_i32_1 : i32, i32, i32
  }
}

module attributes {stable_mosaic.version = 11 : i64} {
  func.func @bn_pool_kernel(%arg0: i32, %arg1: i32, %arg2: memref<1x256x32xbf16, #tpu.memory_space<vmem>>, %arg3: memref<1x1x32xf32, #tpu.memory_space<vmem>>, %arg4: memref<1x1x32xf32, #tpu.memory_space<vmem>>, %arg5: memref<1x1x32xf32, #tpu.memory_space<vmem>>) attributes {dimension_semantics = [#tpu.dimension_semantics<parallel>, #tpu.dimension_semantics<parallel>], iteration_bounds = array<i64: 2, 1>, scalar_prefetch = 0 : i64, scratch_operands = 0 : i64, tpu.core_type = #tpu.core_type<tc>, window_params = [{transform_indices = @transform_0, window_bounds = array<i64: 1, 256, 32>}, {pipeline_mode = #tpu.pipeline_mode<synchronous>, transform_indices = @transform_1, window_bounds = array<i64: 1, 1, 32>}, {pipeline_mode = #tpu.pipeline_mode<synchronous>, transform_indices = @transform_2, window_bounds = array<i64: 1, 1, 32>}, {transform_indices = @transform_3, window_bounds = array<i64: 1, 1, 32>}]} {
    %c0 = arith.constant 0 : index
    %c0_0 = arith.constant 0 : index
    %c0_1 = arith.constant 0 : index
    %0 = vector.load %arg2[%c0, %c0_0, %c0_1] : memref<1x256x32xbf16, #tpu.memory_space<vmem>>, vector<1x256x32xbf16>
    %1 = vector.shape_cast %0 : vector<1x256x32xbf16> to vector<256x32xbf16>
    %2 = arith.extf %1 : vector<256x32xbf16> to vector<256x32xf32>
    %c0_2 = arith.constant 0 : index
    %c0_3 = arith.constant 0 : index
    %c0_4 = arith.constant 0 : index
    %3 = vector.load %arg3[%c0_2, %c0_3, %c0_4] : memref<1x1x32xf32, #tpu.memory_space<vmem>>, vector<1x1x32xf32>
    %4 = vector.shape_cast %3 : vector<1x1x32xf32> to vector<1x32xf32>
    %5 = vector.broadcast %4 : vector<1x32xf32> to vector<256x32xf32>
    %6 = arith.mulf %2, %5 : vector<256x32xf32>
    %c0_5 = arith.constant 0 : index
    %c0_6 = arith.constant 0 : index
    %c0_7 = arith.constant 0 : index
    %7 = vector.load %arg4[%c0_5, %c0_6, %c0_7] : memref<1x1x32xf32, #tpu.memory_space<vmem>>, vector<1x1x32xf32>
    %8 = vector.shape_cast %7 : vector<1x1x32xf32> to vector<1x32xf32>
    %9 = vector.broadcast %8 : vector<1x32xf32> to vector<256x32xf32>
    %10 = arith.addf %6, %9 : vector<256x32xf32>
    %cst = arith.constant 0.000000e+00 : f32
    %11 = vector.broadcast %cst : f32 to vector<256x32xf32>
    %12 = arith.maximumf %10, %11 : vector<256x32xf32>
    %cst_8 = arith.constant dense<0.000000e+00> : vector<32xf32>
    %13 = vector.multi_reduction <add>, %12, %cst_8 [0] : vector<256x32xf32> to vector<32xf32>
    %14 = vector.shape_cast %13 : vector<32xf32> to vector<1x32xf32>
    %c0_9 = arith.constant 0 : index
    %c0_10 = arith.constant 0 : index
    %c0_11 = arith.constant 0 : index
    %15 = vector.load %arg5[%c0_9, %c0_10, %c0_11] : memref<1x1x32xf32, #tpu.memory_space<vmem>>, vector<1x1x32xf32>
    %16 = vector.shape_cast %15 : vector<1x1x32xf32> to vector<1x32xf32>
    %17 = vector.shape_cast %14 : vector<1x32xf32> to vector<1x1x32xf32>
    tpu.vector_store %arg5[%c0_9, %c0_10, %c0_11], %17 {strides = array<i32>} : memref<1x1x32xf32, #tpu.memory_space<vmem>>, vector<1x1x32xf32>,
    return
  }
  func.func @transform_0(%arg0: i32, %arg1: i32) -> (i32, i32, i32) {
    %c0_i32 = arith.constant 0 : i32
    %c0_i32_0 = arith.constant 0 : i32
    return %arg0, %arg1, %c0_i32 : i32, i32, i32
  }
  func.func @transform_1(%arg0: i32, %arg1: i32) -> (i32, i32, i32) {
    %c0_i32 = arith.constant 0 : i32
    %c0_i32_0 = arith.constant 0 : i32
    %c0_i32_1 = arith.constant 0 : i32
    %c0_i32_2 = arith.constant 0 : i32
    return %c0_i32, %c0_i32_0, %c0_i32_1 : i32, i32, i32
  }
  func.func @transform_2(%arg0: i32, %arg1: i32) -> (i32, i32, i32) {
    %c0_i32 = arith.constant 0 : i32
    %c0_i32_0 = arith.constant 0 : i32
    %c0_i32_1 = arith.constant 0 : i32
    %c0_i32_2 = arith.constant 0 : i32
    return %c0_i32, %c0_i32_0, %c0_i32_1 : i32, i32, i32
  }
  func.func @transform_3(%arg0: i32, %arg1: i32) -> (i32, i32, i32) {
    %c0_i32 = arith.constant 0 : i32
    %c0_i32_0 = arith.constant 0 : i32
    return %arg0, %arg1, %c0_i32 : i32, i32, i32
  }
}

module attributes {stable_mosaic.version = 11 : i64} {
  func.func @apply_kernel(%arg0: i32, %arg1: i32, %arg2: memref<1x256x32xbf16, #tpu.memory_space<vmem>>, %arg3: memref<1x1x32xf32, #tpu.memory_space<vmem>>, %arg4: memref<1x1x32xf32, #tpu.memory_space<vmem>>, %arg5: memref<1x1x32xf32, #tpu.memory_space<vmem>>, %arg6: memref<1x256x32xf32, #tpu.memory_space<vmem>>) attributes {dimension_semantics = [#tpu.dimension_semantics<parallel>, #tpu.dimension_semantics<parallel>], iteration_bounds = array<i64: 2, 1>, scalar_prefetch = 0 : i64, scratch_operands = 0 : i64, tpu.core_type = #tpu.core_type<tc>, window_params = [{transform_indices = @transform_0, window_bounds = array<i64: 1, 256, 32>}, {pipeline_mode = #tpu.pipeline_mode<synchronous>, transform_indices = @transform_1, window_bounds = array<i64: 1, 1, 32>}, {pipeline_mode = #tpu.pipeline_mode<synchronous>, transform_indices = @transform_2, window_bounds = array<i64: 1, 1, 32>}, {transform_indices = @transform_3, window_bounds = array<i64: 1, 1, 32>}, {transform_indices = @transform_4, window_bounds = array<i64: 1, 256, 32>}]} {
    %c0 = arith.constant 0 : index
    %c0_0 = arith.constant 0 : index
    %c0_1 = arith.constant 0 : index
    %0 = vector.load %arg2[%c0, %c0_0, %c0_1] : memref<1x256x32xbf16, #tpu.memory_space<vmem>>, vector<1x256x32xbf16>
    %1 = vector.shape_cast %0 : vector<1x256x32xbf16> to vector<256x32xbf16>
    %2 = arith.extf %1 : vector<256x32xbf16> to vector<256x32xf32>
    %c0_2 = arith.constant 0 : index
    %c0_3 = arith.constant 0 : index
    %c0_4 = arith.constant 0 : index
    %3 = vector.load %arg3[%c0_2, %c0_3, %c0_4] : memref<1x1x32xf32, #tpu.memory_space<vmem>>, vector<1x1x32xf32>
    %4 = vector.shape_cast %3 : vector<1x1x32xf32> to vector<1x32xf32>
    %5 = vector.broadcast %4 : vector<1x32xf32> to vector<256x32xf32>
    %6 = arith.mulf %2, %5 : vector<256x32xf32>
    %c0_5 = arith.constant 0 : index
    %c0_6 = arith.constant 0 : index
    %c0_7 = arith.constant 0 : index
    %7 = vector.load %arg4[%c0_5, %c0_6, %c0_7] : memref<1x1x32xf32, #tpu.memory_space<vmem>>, vector<1x1x32xf32>
    %8 = vector.shape_cast %7 : vector<1x1x32xf32> to vector<1x32xf32>
    %9 = vector.broadcast %8 : vector<1x32xf32> to vector<256x32xf32>
    %10 = arith.addf %6, %9 : vector<256x32xf32>
    %cst = arith.constant 0.000000e+00 : f32
    %11 = vector.broadcast %cst : f32 to vector<256x32xf32>
    %12 = arith.maximumf %10, %11 : vector<256x32xf32>
    %c0_8 = arith.constant 0 : index
    %c0_9 = arith.constant 0 : index
    %c0_10 = arith.constant 0 : index
    %13 = vector.load %arg5[%c0_8, %c0_9, %c0_10] : memref<1x1x32xf32, #tpu.memory_space<vmem>>, vector<1x1x32xf32>
    %14 = vector.shape_cast %13 : vector<1x1x32xf32> to vector<1x32xf32>
    %15 = vector.broadcast %14 : vector<1x32xf32> to vector<256x32xf32>
    %16 = arith.mulf %12, %15 : vector<256x32xf32>
    %c0_11 = arith.constant 0 : index
    %c0_12 = arith.constant 0 : index
    %c0_13 = arith.constant 0 : index
    %17 = vector.load %arg6[%c0_11, %c0_12, %c0_13] : memref<1x256x32xf32, #tpu.memory_space<vmem>>, vector<1x256x32xf32>
    %18 = vector.shape_cast %17 : vector<1x256x32xf32> to vector<256x32xf32>
    %19 = vector.shape_cast %16 : vector<256x32xf32> to vector<1x256x32xf32>
    tpu.vector_store %arg6[%c0_11, %c0_12, %c0_13], %19 {strides = array<i32>} : memref<1x256x32xf32, #tpu.memory_space<vmem>>, vector<1x256x32xf32>,
    return
  }
  func.func @transform_0(%arg0: i32, %arg1: i32) -> (i32, i32, i32) {
    %c0_i32 = arith.constant 0 : i32
    %c0_i32_0 = arith.constant 0 : i32
    return %arg0, %arg1, %c0_i32 : i32, i32, i32
  }
  func.func @transform_1(%arg0: i32, %arg1: i32) -> (i32, i32, i32) {
    %c0_i32 = arith.constant 0 : i32
    %c0_i32_0 = arith.constant 0 : i32
    %c0_i32_1 = arith.constant 0 : i32
    %c0_i32_2 = arith.constant 0 : i32
    return %c0_i32, %c0_i32_0, %c0_i32_1 : i32, i32, i32
  }
  func.func @transform_2(%arg0: i32, %arg1: i32) -> (i32, i32, i32) {
    %c0_i32 = arith.constant 0 : i32
    %c0_i32_0 = arith.constant 0 : i32
    %c0_i32_1 = arith.constant 0 : i32
    %c0_i32_2 = arith.constant 0 : i32
    return %c0_i32, %c0_i32_0, %c0_i32_1 : i32, i32, i32
  }
  func.func @transform_3(%arg0: i32, %arg1: i32) -> (i32, i32, i32) {
    %c0_i32 = arith.constant 0 : i32
    %c0_i32_0 = arith.constant 0 : i32
    %c0_i32_1 = arith.constant 0 : i32
    return %arg0, %c0_i32, %c0_i32_0 : i32, i32, i32
  }
  func.func @transform_4(%arg0: i32, %arg1: i32) -> (i32, i32, i32) {
    %c0_i32 = arith.constant 0 : i32
    %c0_i32_0 = arith.constant 0 : i32
    return %arg0, %arg1, %c0_i32 : i32, i32, i32
  }
}

module attributes {stable_mosaic.version = 11 : i64} {
  func.func @se_gate_kernel(%arg0: i32, %arg1: memref<1x1x32xf32, #tpu.memory_space<vmem>>, %arg2: memref<32x2xf32, #tpu.memory_space<vmem>>, %arg3: memref<2x32xf32, #tpu.memory_space<vmem>>, %arg4: memref<1x1x32xf32, #tpu.memory_space<vmem>>) attributes {dimension_semantics = [#tpu.dimension_semantics<parallel>], iteration_bounds = array<i64: 2>, scalar_prefetch = 0 : i64, scratch_operands = 0 : i64, tpu.core_type = #tpu.core_type<tc>, window_params = [{transform_indices = @transform_0, window_bounds = array<i64: 1, 1, 32>}, {pipeline_mode = #tpu.pipeline_mode<synchronous>, transform_indices = @transform_1, window_bounds = array<i64: 32, 2>}, {pipeline_mode = #tpu.pipeline_mode<synchronous>, transform_indices = @transform_2, window_bounds = array<i64: 2, 32>}, {transform_indices = @transform_3, window_bounds = array<i64: 1, 1, 32>}]} {
    %c0 = arith.constant 0 : index
    %c0_0 = arith.constant 0 : index
    %c0_1 = arith.constant 0 : index
    %0 = vector.load %arg1[%c0, %c0_0, %c0_1] : memref<1x1x32xf32, #tpu.memory_space<vmem>>, vector<1x1x32xf32>
    %1 = vector.shape_cast %0 : vector<1x1x32xf32> to vector<1x32xf32>
    %cst = arith.constant dense<0.000000e+00> : vector<32xf32>
    %2 = vector.multi_reduction <add>, %1, %cst [0] : vector<1x32xf32> to vector<32xf32>
    %3 = vector.shape_cast %2 : vector<32xf32> to vector<1x32xf32>
    %cst_2 = arith.constant 3.906250e-03 : f32
    %4 = vector.broadcast %cst_2 : f32 to vector<1x32xf32>
    %5 = arith.mulf %3, %4 : vector<1x32xf32>
    %c0_3 = arith.constant 0 : index
    %c0_4 = arith.constant 0 : index
    %6 = vector.load %arg2[%c0_3, %c0_4] : memref<32x2xf32, #tpu.memory_space<vmem>>, vector<32x2xf32>
    %cst_5 = arith.constant dense<0.000000e+00> : vector<1x2xf32>
    %7 = tpu.matmul %5, %6, %cst_5 {dimension_numbers = #tpu.dot_dimension_numbers<[1], [0], [0], [1], [0, 0, 1, 1], [], []>} : vector<1x32xf32>, vector<32x2xf32>, vector<1x2xf32> -> vector<1x2xf32>
    %cst_6 = arith.constant 0.000000e+00 : f32
    %8 = vector.broadcast %cst_6 : f32 to vector<1x2xf32>
    %9 = arith.maximumf %7, %8 : vector<1x2xf32>
    %c0_7 = arith.constant 0 : index
    %c0_8 = arith.constant 0 : index
    %10 = vector.load %arg3[%c0_7, %c0_8] : memref<2x32xf32, #tpu.memory_space<vmem>>, vector<2x32xf32>
    %cst_9 = arith.constant dense<0.000000e+00> : vector<1x32xf32>
    %11 = tpu.matmul %9, %10, %cst_9 {dimension_numbers = #tpu.dot_dimension_numbers<[1], [0], [0], [1], [0, 0, 1, 1], [], []>} : vector<1x2xf32>, vector<2x32xf32>, vector<1x32xf32> -> vector<1x32xf32>
    %12 = arith.negf %11 : vector<1x32xf32>
    %13 = math.exp %12 : vector<1x32xf32>
    %cst_10 = arith.constant 1.000000e+00 : f32
    %14 = vector.broadcast %cst_10 : f32 to vector<1x32xf32>
    %15 = arith.addf %14, %13 : vector<1x32xf32>
    %16 = arith.divf %14, %15 : vector<1x32xf32>
    %c0_11 = arith.constant 0 : index
    %c0_12 = arith.constant 0 : index
    %c0_13 = arith.constant 0 : index
    %17 = vector.load %arg4[%c0_11, %c0_12, %c0_13] : memref<1x1x32xf32, #tpu.memory_space<vmem>>, vector<1x1x32xf32>
    %18 = vector.shape_cast %17 : vector<1x1x32xf32> to vector<1x32xf32>
    %19 = vector.shape_cast %16 : vector<1x32xf32> to vector<1x1x32xf32>
    tpu.vector_store %arg4[%c0_11, %c0_12, %c0_13], %19 {strides = array<i32>} : memref<1x1x32xf32, #tpu.memory_space<vmem>>, vector<1x1x32xf32>,
    return
  }
  func.func @transform_0(%arg0: i32) -> (i32, i32, i32) {
    %c0_i32 = arith.constant 0 : i32
    %c0_i32_0 = arith.constant 0 : i32
    %c0_i32_1 = arith.constant 0 : i32
    return %arg0, %c0_i32, %c0_i32_0 : i32, i32, i32
  }
  func.func @transform_1(%arg0: i32) -> (i32, i32) {
    %c0_i32 = arith.constant 0 : i32
    %c0_i32_0 = arith.constant 0 : i32
    %c0_i32_1 = arith.constant 0 : i32
    return %c0_i32, %c0_i32_0 : i32, i32
  }
  func.func @transform_2(%arg0: i32) -> (i32, i32) {
    %c0_i32 = arith.constant 0 : i32
    %c0_i32_0 = arith.constant 0 : i32
    %c0_i32_1 = arith.constant 0 : i32
    return %c0_i32, %c0_i32_0 : i32, i32
  }
  func.func @transform_3(%arg0: i32) -> (i32, i32, i32) {
    %c0_i32 = arith.constant 0 : i32
    %c0_i32_0 = arith.constant 0 : i32
    %c0_i32_1 = arith.constant 0 : i32
    return %arg0, %c0_i32, %c0_i32_0 : i32, i32, i32
  }
}

</mosaic_0001>

<llo_original>
// kernel: conv_block_forward.6
$region0: #{conv_block_forward.6}
  #allocation0 [shape = 'u32[]', space=smem, size = 0x4, offset = 0x4, fixed_abs, tag = 'smem constant byte address 0x4 - core index']
  #allocation1 [shape = 'u32[144,128]{1,0:T(1,128)}', space=vmem, size = 0x12000, scoped, tag = 'internal scratch']
  %s0 = inlined_call_operand.vmem [shape: f32[2,1,32], index: 0, kind: input, shape index: {}]
  %s1 = inlined_call_operand.vmem [shape: f32[2,1,32], index: 1, kind: input, shape index: {}]
  %s2 = inlined_call_operand.vmem [shape: f32[1,1,32], index: 2, kind: input, shape index: {}]
  %s3 = inlined_call_operand.vmem [shape: f32[1,1,32], index: 3, kind: input, shape index: {}]
  %s4 = inlined_call_operand.vmem [shape: f32[1,1,32], index: 4, kind: output, shape index: {0}]
  %s5 = inlined_call_operand.vmem [shape: f32[1,1,32], index: 5, kind: output, shape index: {1}]
  %6 = xla_tuple %s4, %s5
  %s7 = sld [smem:[#allocation0]]
  $region34: #{conv_block_forward.6} parent=0
    _
  %s9 = ssub.s32 1, %s7
  %s10 = scalar_select 0, %s9, %s7
  // Predicated region
  $region2: #{conv_block_forward.6} parent=0 // pred_check
    _
  $region3: #{conv_block_forward.6} parent=0 // pred_check_branch
    %12 = sbr.rel (0) target = $region5
  $region4: #{conv_block_forward.6} parent=0 // pred_region
    _
  $region5: #{conv_block_forward.6} parent=0 // pred_fallthru
    _
  // Predicated region
  $region6: #{conv_block_forward.6} parent=0 // pred_check
    _
  $region7: #{conv_block_forward.6} parent=0 // pred_check_branch
    %14 = sbr.rel (0) target = $region9
  $region8: #{conv_block_forward.6} parent=0 // pred_region
    _
  $region9: #{conv_block_forward.6} parent=0 // pred_fallthru
    _
  // Predicated region
  $region10: #{conv_block_forward.6} parent=0 // pred_check
    _
  $region11: #{conv_block_forward.6} parent=0 // pred_check_branch
    %16 = sbr.rel (0) target = $region13
  $region12: #{conv_block_forward.6} parent=0 // pred_region
    _
  $region13: #{conv_block_forward.6} parent=0 // pred_fallthru
    _
  // Predicated region
  $region14: #{conv_block_forward.6} parent=0 // pred_check
    _
  $region15: #{conv_block_forward.6} parent=0 // pred_check_branch
    %18 = sbr.rel (0) target = $region17
  $region16: #{conv_block_forward.6} parent=0 // pred_region
    _
  $region17: #{conv_block_forward.6} parent=0 // pred_fallthru
    _
  %v19 = vld [vmem:[%s0] sm:$0x1]
  %v20 = vld [vmem:[%s0 + $0x1] sm:$0x1]
  %vm21 = vcmask 253952
  %v22 = vsel %vm21, %v19, 0.0
  %v23 = vsel %vm21, %v20, 0.0
  %v24 = vadd.f32 %v22, %v23
  %v25 = vrot.slane %v24, 4
  %v26 = vadd.f32 %v24, %v25
  %v27 = vrot.slane %v26, 2
  %v28 = vadd.f32 %v26, %v27
  %v29 = vrot.slane %v28, 1
  %v30 = vadd.f32 %v28, %v29
  %v31 = vld [vmem:[%s1] sm:$0x1]
  %v32 = vld [vmem:[%s1 + $0x1] sm:$0x1]
  %v33 = vsel %vm21, %v31, 0.0
  %v34 = vsel %vm21, %v32, 0.0
  %v35 = vadd.f32 %v33, %v34
  %v36 = vrot.slane %v35, 4
  %v37 = vadd.f32 %v35, %v36
  %v38 = vrot.slane %v37, 2
  %v39 = vadd.f32 %v37, %v38
  %v40 = vrot.slane %v39, 1
  %v41 = vadd.f32 %v39, %v40
  %v42 = vmul.f32 %v30, 0.001953125
  %v43 = vmul.f32 %v41, 0.001953125
  %v44 = vmul.f32 %v42, %v42
  %v45 = vsub.f32 %v43, %v44
  %v46 = vld [vmem:[%s2] sm:$0x1]
  %v47 = vadd.f32 %v45, 1e-05
  %v48 = vrsqrt.pop %v47
  %v49 = vmul.f32 %v46, %v48
  %v50 = vld [vmem:[%s3] sm:$0x1]
  %v51 = vmul.f32 %v42, %v49
  %v52 = vsub.f32 %v50, %v51
  %53 = vst.msk [vmem:[%s4] sm:$0x1] %vm21, %v49
  %54 = vst.msk [vmem:[%s5] sm:$0x1] %vm21, %v52
  // Predicated region
  $region18: #{conv_block_forward.6} parent=0 // pred_check
    _
  $region19: #{conv_block_forward.6} parent=0 // pred_check_branch
    %56 = sbr.rel (0) target = $region21
  $region20: #{conv_block_forward.6} parent=0 // pred_region
    _
  $region21: #{conv_block_forward.6} parent=0 // pred_fallthru
    _
  // Predicated region
  $region22: #{conv_block_forward.6} parent=0 // pred_check
    _
  $region23: #{conv_block_forward.6} parent=0 // pred_check_branch
    %58 = sbr.rel (0) target = $region25
  $region24: #{conv_block_forward.6} parent=0 // pred_region
    _
  $region25: #{conv_block_forward.6} parent=0 // pred_fallthru
    _
  // Predicated region
  $region26: #{conv_block_forward.6} parent=0 // pred_check
    _
  $region27: #{conv_block_forward.6} parent=0 // pred_check_branch
    %60 = sbr.rel (0) target = $region29
  $region28: #{conv_block_forward.6} parent=0 // pred_region
    _
  $region29: #{conv_block_forward.6} parent=0 // pred_fallthru
    _
  // Predicated region
  $region30: #{conv_block_forward.6} parent=0 // pred_check
    _
  $region31: #{conv_block_forward.6} parent=0 // pred_check_branch
    %62 = sbr.rel (0) target = $region33
  $region32: #{conv_block_forward.6} parent=0 // pred_region
    _
  $region33: #{conv_block_forward.6} parent=0 // pred_fallthru
    _

// kernel: conv_block_forward.5
$region0: #{conv_block_forward.5}
  #allocation0 [shape = 'u32[]', space=smem, size = 0x4, offset = 0x4, fixed_abs, tag = 'smem constant byte address 0x4 - core index']
  #allocation1 [shape = 'u32[144,128]{1,0:T(1,128)}', space=vmem, size = 0x12000, scoped, tag = 'internal scratch']
  %s0 = inlined_call_operand.vmem [shape: bf16[2,256,36], index: 0, kind: input, shape index: {}]
  %s1 = inlined_call_operand.vmem [shape: bf16[36,32], index: 1, kind: input, shape index: {}]
  %s2 = inlined_call_operand.vmem [shape: bf16[2,256,32], index: 2, kind: output, shape index: {0}]
  %s3 = inlined_call_operand.vmem [shape: f32[2,1,32], index: 3, kind: output, shape index: {1}]
  %s4 = inlined_call_operand.vmem [shape: f32[2,1,32], index: 4, kind: output, shape index: {2}]
  %5 = xla_tuple %s2, %s3, %s4
  %s6 = sld [smem:[#allocation0]]
  $region57: #{conv_block_forward.5} parent=0
    _
  %s8 = ssub.s32 1, %s6
  %s9 = scalar_select 0, %s8, %s6
  loop: start=0, step=1, limit=4
  $region2: #{conv_block_forward.5} parent=0 // loop_pre_header
    _
  $region3: #{conv_block_forward.5} parent=0 // loop_header
    %s11 = sphi 0, %s15
    %p12 = scmp.ge.s32.totalorder %s11, 4
    %s18 = sphi 0, %s30
    %s19 = sphi 0, %s26
    %s20 = sphi 0, %s18
    %s21 = sphi 0, %s19
    %s22 = sphi 0, %s20
    %s23 = sphi 0, %s21
    %s35 = sphi 0, %s37
    %s38 = sphi 0, %s35
    %s39 = sphi 0, %s38
    %s55 = sphi 0, %s39
    %s59 = sphi 0, %s59
    %s61 = sphi 0, %s59
    %s62 = sphi 0, %s61
    %s76 = sphi 0, %s62
    %s84 = sphi 0, %s86
    %s87 = sphi 0, %s84
    %s88 = sphi 0, %s87
    %s104 = sphi 0, %s88
    %s112 = sphi 0, %s114
    %s115 = sphi 0, %s112
    %s116 = sphi 0, %s115
    %s132 = sphi 0, %s116
    %s140 = sphi 0, %s142
    %s143 = sphi 0, %s140
    %s144 = sphi 0, %s143
    %s160 = sphi 0, %s144
  $region4: #{conv_block_forward.5} parent=0 // loop_header_branch
    %14 = sbr.rel (%p12) target = $region8
  $region5: #{conv_block_forward.5} parent=0 // loop_body
    %s16 = ssub.s32 %s11, 1
    %s17 = ssub.s32 %s11, 2
    %s24 = sadd.s32 1, %s19
    %p25 = scmp.ge.s32.totalorder %s24, 1
    %s26 = scalar_select %p25, 0, %s24
    %s27 = sadd.s32 1, %s18
    %s28 = scalar_select %p25, %s27, %s18
    %p29 = scmp.ge.s32.totalorder %s28, 2
    %s30 = scalar_select %p29, 0, %s28
    %s31 = ssub.s32 %s18, %s30
    %s32 = ssub.s32 %s19, %s26
    %s33 = sor.u32 %s31, %s32
    %p34 = scmp.eq.s32.totalorder %s33, 0
    %s36 = sadd.s32 %s35, 1
    %s37 = scalar_select %p34, %s35, %s36
    %p40 = pneg %p34
    %p41 = scmp.eq.s32.totalorder %s11, 1
    %p42 = por %p40, %p41
    %p43 = scmp.ne.s32.totalorder %s35, %s38
    %p44 = scmp.eq.s32.totalorder %s11, 0
    %p45 = por %p43, %p44
    %p46 = scmp.ne.s32.totalorder %s35, %s38
    %p47 = scmp.eq.s32.totalorder %s16, 1
    %p48 = por %p46, %p47
    %p49 = scmp.ne.s32.totalorder %s38, %s39
    %p50 = scmp.eq.s32.totalorder %s16, 0
    %p51 = por %p49, %p50
    %p52 = scmp.ne.s32.totalorder %s38, %s39
    %p53 = scmp.eq.s32.totalorder %s17, 1
    %p54 = por %p52, %p53
    %p56 = scmp.ne.s32.totalorder %s39, %s55
    %p57 = scmp.eq.s32.totalorder %s17, 0
    %p58 = por %p56, %p57
    %s60 = sadd.s32 %s59, 1
    %p63 = scmp.eq.s32.totalorder %s11, 1
    %p64 = scmp.ne.s32.totalorder %s59, %s61
    %p65 = scmp.eq.s32.totalorder %s11, 0
    %p66 = por %p64, %p65
    %p67 = scmp.ne.s32.totalorder %s59, %s61
    %p68 = scmp.eq.s32.totalorder %s16, 1
    %p69 = por %p67, %p68
    %p70 = scmp.ne.s32.totalorder %s61, %s62
    %p71 = scmp.eq.s32.totalorder %s16, 0
    %p72 = por %p70, %p71
    %p73 = scmp.ne.s32.totalorder %s61, %s62
    %p74 = scmp.eq.s32.totalorder %s17, 1
    %p75 = por %p73, %p74
    %p77 = scmp.ne.s32.totalorder %s62, %s76
    %p78 = scmp.eq.s32.totalorder %s17, 0
    %p79 = por %p77, %p78
    %s80 = ssub.s32 %s18, %s30
    %s81 = ssub.s32 %s19, %s26
    %s82 = sor.u32 %s80, %s81
    %p83 = scmp.eq.s32.totalorder %s82, 0
    %s85 = sadd.s32 %s84, 1
    %s86 = scalar_select %p83, %s84, %s85
    %p89 = pneg %p83
    %p90 = scmp.eq.s32.totalorder %s11, 1
    %p91 = por %p89, %p90
    %p92 = scmp.ne.s32.totalorder %s84, %s87
    %p93 = scmp.eq.s32.totalorder %s11, 0
    %p94 = por %p92, %p93
    %p95 = scmp.ne.s32.totalorder %s84, %s87
    %p96 = scmp.eq.s32.totalorder %s16, 1
    %p97 = por %p95, %p96
    %p98 = scmp.ne.s32.totalorder %s87, %s88
    %p99 = scmp.eq.s32.totalorder %s16, 0
    %p100 = por %p98, %p99
    %p101 = scmp.ne.s32.totalorder %s87, %s88
    %p102 = scmp.eq.s32.totalorder %s17, 1
    %p103 = por %p101, %p102
    %p105 = scmp.ne.s32.totalorder %s88, %s104
    %p106 = scmp.eq.s32.totalorder %s17, 0
    %p107 = por %p105, %p106
    %s108 = ssub.s32 %s18, %s30
    %s109 = ssub.s32 %s19, %s26
    %s110 = sor.u32 %s108, %s109
    %p111 = scmp.eq.s32.totalorder %s110, 0
    %s113 = sadd.s32 %s112, 1
    %s114 = scalar_select %p111, %s112, %s113
    %p117 = pneg %p111
    %p118 = scmp.eq.s32.totalorder %s11, 1
    %p119 = por %p117, %p118
    %p120 = scmp.ne.s32.totalorder %s112, %s115
    %p121 = scmp.eq.s32.totalorder %s11, 0
    %p122 = por %p120, %p121
    %p123 = scmp.ne.s32.totalorder %s112, %s115
    %p124 = scmp.eq.s32.totalorder %s16, 1
    %p125 = por %p123, %p124
    %p126 = scmp.ne.s32.totalorder %s115, %s116
    %p127 = scmp.eq.s32.totalorder %s16, 0
    %p128 = por %p126, %p127
    %p129 = scmp.ne.s32.totalorder %s115, %s116
    %p130 = scmp.eq.s32.totalorder %s17, 1
    %p131 = por %p129, %p130
    %p133 = scmp.ne.s32.totalorder %s116, %s132
    %p134 = scmp.eq.s32.totalorder %s17, 0
    %p135 = por %p133, %p134
    %s136 = ssub.s32 %s18, %s30
    %s137 = ssub.s32 %s19, %s26
    %s138 = sor.u32 %s136, %s137
    %p139 = scmp.eq.s32.totalorder %s138, 0
    %s141 = sadd.s32 %s140, 1
    %s142 = scalar_select %p139, %s140, %s141
    %p145 = pneg %p139
    %p146 = scmp.eq.s32.totalorder %s11, 1
    %p147 = por %p145, %p146
    %p148 = scmp.ne.s32.totalorder %s140, %s143
    %p149 = scmp.eq.s32.totalorder %s11, 0
    %p150 = por %p148, %p149
    %p151 = scmp.ne.s32.totalorder %s140, %s143
    %p152 = scmp.eq.s32.totalorder %s16, 1
    %p153 = por %p151, %p152
    %p154 = scmp.ne.s32.totalorder %s143, %s144
    %p155 = scmp.eq.s32.totalorder %s16, 0
    %p156 = por %p154, %p155
    %p157 = scmp.ne.s32.totalorder %s143, %s144
    %p158 = scmp.eq.s32.totalorder %s17, 1
    %p159 = por %p157, %p158
    %p161 = scmp.ne.s32.totalorder %s144, %s160
    %p162 = scmp.eq.s32.totalorder %s17, 0
    %p163 = por %p161, %p162
    %p164 = scmp.le.s32.totalorder 1, %s11
    %p165 = scmp.lt.s32.totalorder %s11, 3
    %p166 = pnand %p164, %p165
    %p167 = pneg %p166
    // Predicated region
    $region9: #{conv_block_forward.5} parent=5 // pred_check
      _
    $region10: #{conv_block_forward.5} parent=5 // pred_check_branch
      %169 = sbr.rel (%p166) target = $region12
    $region11: #{conv_block_forward.5} parent=5 // pred_region
      %s170 = ssub.s32 %s11, 1
      // Predicated region
      $region13: #{conv_block_forward.5} parent=11 // pred_check
        %p171 = pneg %p72
      $region14: #{conv_block_forward.5} parent=11 // pred_check_branch
        %173 = sbr.rel (%p171) target = $region16
      $region15: #{conv_block_forward.5} parent=11 // pred_region
        _
      $region16: #{conv_block_forward.5} parent=11 // pred_fallthru
        _
    $region12: #{conv_block_forward.5} parent=5 // pred_fallthru
      _
    %p174 = scmp.lt.s32.totalorder %s11, 2
    // Predicated region
    $region17: #{conv_block_forward.5} parent=5 // pred_check
      %p175 = pneg %p174
    $region18: #{conv_block_forward.5} parent=5 // pred_check_branch
      %177 = sbr.rel (%p175) target = $region20
    $region19: #{conv_block_forward.5} parent=5 // pred_region
      // Predicated region
      $region21: #{conv_block_forward.5} parent=19 // pred_check
        %p178 = pneg %p45
      $region22: #{conv_block_forward.5} parent=19 // pred_check_branch
        %180 = sbr.rel (%p178) target = $region24
      $region23: #{conv_block_forward.5} parent=19 // pred_region
        %s181 = smul.u32 32, %s19
        %p182 = scmp.lt.s32.totalorder %s18, 1
        %s183 = scalar_select %p182, %s18, 1
        %p184 = scmp.lt.s32.totalorder %s181, 31
        %s185 = scalar_select %p184, %s181, 31
        %s186 = smul.addr %s183, 32
        %s187 = sadd.s32 %s185, %s186
        %s188 = smul.addr %s187, 4
        %s189 = scalar_lea.vmem %s0, %s188
        %s190 = smul.u32 32, %s19
      $region24: #{conv_block_forward.5} parent=19 // pred_fallthru
        _
    $region20: #{conv_block_forward.5} parent=5 // pred_fallthru
      _
    %p191 = scmp.le.s32.totalorder 1, %s11
    %p192 = scmp.lt.s32.totalorder %s11, 3
    %p193 = pnand %p191, %p192
    %p194 = pneg %p193
    // Predicated region
    $region25: #{conv_block_forward.5} parent=5 // pred_check
      _
    $region26: #{conv_block_forward.5} parent=5 // pred_check_branch
      %196 = sbr.rel (%p193) target = $region28
    $region27: #{conv_block_forward.5} parent=5 // pred_region
      %s197 = ssub.s32 %s11, 1
      %s198 = smul.u32 32, %s21
      %p199 = scmp.lt.s32.totalorder %s20, 1
      %s200 = scalar_select %p199, %s20, 1
      %p201 = scmp.lt.s32.totalorder %s198, 31
      %s202 = scalar_select %p201, %s198, 31
      %s203 = smul.addr %s200, 32
      %s204 = sadd.s32 %s202, %s203
      %s205 = smul.addr %s204, 4
      %s206 = scalar_lea.vmem %s0, %s205
      %p207 = pneg %p51
      %p208 = pneg %p48
      %p209 = pneg %p72
      %p210 = pneg %p69
      %p211 = pneg %p100
      %p212 = pneg %p97
      %s213 = smul.u32 32, %s21
      %p214 = scmp.lt.s32.totalorder %s20, 1
      %s215 = scalar_select %p214, %s20, 1
      %p216 = scmp.lt.s32.totalorder %s213, 31
      %s217 = scalar_select %p216, %s213, 31
      %s218 = smul.addr %s215, 32
      %s219 = sadd.s32 %s217, %s218
      %s220 = smul.addr %s219, 4
      %s221 = scalar_lea.vmem %s2, %s220
      %p222 = pneg %p128
      %p223 = pneg %p125
      %p224 = scmp.lt.s32.totalorder %s20, 1
      %s225 = scalar_select %p224, %s20, 1
      %p226 = scmp.lt.s32.totalorder %s21, 0
      %s227 = scalar_select %p226, %s21, 0
      %s228 = sadd.s32 %s227, %s225
      %s229 = scalar_lea.vmem %s3, %s228
      %p230 = pneg %p156
      %p231 = pneg %p153
      %p232 = scmp.lt.s32.totalorder %s20, 1
      %s233 = scalar_select %p232, %s20, 1
      %p234 = scmp.lt.s32.totalorder %s21, 0
      %s235 = scalar_select %p234, %s21, 0
      %s236 = sadd.s32 %s235, %s233
      %s237 = scalar_lea.vmem %s4, %s236
      %s238 = smul.u32 32, %s21
      %p239 = scmp.lt.s32.totalorder %s20, 1
      %s240 = scalar_select %p239, %s20, 1
      %p241 = scmp.lt.s32.totalorder %s238, 31
      %s242 = scalar_select %p241, %s238, 31
      %s243 = smul.addr %s240, 32
      %s244 = sadd.s32 %s242, %s243
      %s245 = smul.addr %s244, 4
      %s246 = scalar_lea.vmem %s0, %s245
      %s247 = smul.u32 32, %s21
      %s248 = smul.u32 32, %s21
      %p249 = scmp.lt.s32.totalorder %s20, 1
      %s250 = scalar_select %p249, %s20, 1
      %p251 = scmp.lt.s32.totalorder %s248, 31
      %s252 = scalar_select %p251, %s248, 31
      %s253 = smul.addr %s250, 32
      %s254 = sadd.s32 %s252, %s253
      %s255 = smul.addr %s254, 4
      %s256 = scalar_lea.vmem %s2, %s255
      %s257 = smul.u32 32, %s21
      %p258 = scmp.lt.s32.totalorder %s20, 1
      %s259 = scalar_select %p258, %s20, 1
      %p260 = scmp.lt.s32.totalorder %s21, 0
      %s261 = scalar_select %p260, %s21, 0
      %s262 = sadd.s32 %s261, %s259
      %s263 = scalar_lea.vmem %s3, %s262
      %p264 = scmp.lt.s32.totalorder %s20, 1
      %s265 = scalar_select %p264, %s20, 1
      %p266 = scmp.lt.s32.totalorder %s21, 0
      %s267 = scalar_select %p266, %s21, 0
      %s268 = sadd.s32 %s267, %s265
      %s269 = scalar_lea.vmem %s4, %s268
      %v271 = vld [vmem:[%s246] sm:$0xf]
      %v272 = vld [vmem:[%s246 + $0x4] sm:$0xf]
      %v273 = vld [vmem:[%s246 + $0x8] sm:$0xf]
      %v274 = vld [vmem:[%s246 + $0xc] sm:$0xf]
      %v275 = vld [vmem:[%s246 + $0x10] sm:$0xf]
      %v276 = vld [vmem:[%s246 + $0x14] sm:$0xf]
      %v277 = vld [vmem:[%s246 + $0x18] sm:$0xf]
      %v278 = vld [vmem:[%s246 + $0x1c] sm:$0xf]
      %v279 = vld [vmem:[%s246 + $0x20] sm:$0xf]
      %v280 = vld [vmem:[%s246 + $0x24] sm:$0xf]
      %v281 = vld [vmem:[%s246 + $0x28] sm:$0xf]
      %v282 = vld [vmem:[%s246 + $0x2c] sm:$0xf]
      %v283 = vld [vmem:[%s246 + $0x30] sm:$0xf]
      %v284 = vld [vmem:[%s246 + $0x34] sm:$0xf]
      %v285 = vld [vmem:[%s246 + $0x38] sm:$0xf]
      %v286 = vld [vmem:[%s246 + $0x3c] sm:$0xf]
      %v287 = vld [vmem:[%s246 + $0x40] sm:$0xf]
      %v288 = vld [vmem:[%s246 + $0x44] sm:$0xf]
      %v289 = vld [vmem:[%s246 + $0x48] sm:$0xf]
      %v290 = vld [vmem:[%s246 + $0x4c] sm:$0xf]
      %v291 = vld [vmem:[%s246 + $0x50] sm:$0xf]
      %v292 = vld [vmem:[%s246 + $0x54] sm:$0xf]
      %v293 = vld [vmem:[%s246 + $0x58] sm:$0xf]
      %v294 = vld [vmem:[%s246 + $0x5c] sm:$0xf]
      %v295 = vld [vmem:[%s246 + $0x60] sm:$0xf]
      %v296 = vld [vmem:[%s246 + $0x64] sm:$0xf]
      %v297 = vld [vmem:[%s246 + $0x68] sm:$0xf]
      %v298 = vld [vmem:[%s246 + $0x6c] sm:$0xf]
      %v299 = vld [vmem:[%s246 + $0x70] sm:$0xf]
      %v300 = vld [vmem:[%s246 + $0x74] sm:$0xf]
      %v301 = vld [vmem:[%s246 + $0x78] sm:$0xf]
      %v302 = vld [vmem:[%s246 + $0x7c] sm:$0xf]
      %v303 = vld [vmem:[%s1] sm:$0xf]
      %v304 = vld [vmem:[%s1 + $0x4] sm:$0xf]
      %v305 = vld [vmem:[%s1 + $0x8] sm:$0xf]
      %v306 = vld [vmem:[%s1 + $0xc] sm:$0xf]
      %v307 = vld [vmem:[%s1 + $0x10] sm:$0x3]
      %v340 = vunpack.c.l.b16 %v271
      %v341 = vunpack.c.l.b16 %v272
      %v342 = vunpack.c.l.b16 %v273
      %v343 = vunpack.c.l.b16 %v274
      %v344 = vunpack.c.l.b16 %v275
      %v345 = vunpack.c.l.b16 %v276
      %v346 = vunpack.c.l.b16 %v277
      %v347 = vunpack.c.l.b16 %v278
      %v348 = vunpack.c.l.b16 %v279
      %v349 = vunpack.c.l.b16 %v280
      %v350 = vunpack.c.l.b16 %v281
      %v351 = vunpack.c.l.b16 %v282
      %v352 = vunpack.c.l.b16 %v283
      %v353 = vunpack.c.l.b16 %v284
      %v354 = vunpack.c.l.b16 %v285
      %v355 = vunpack.c.l.b16 %v286
      %v356 = vunpack.c.l.b16 %v287
      %v357 = vunpack.c.l.b16 %v288
      %v358 = vunpack.c.l.b16 %v289
      %v359 = vunpack.c.l.b16 %v290
      %v360 = vunpack.c.l.b16 %v291
      %v361 = vunpack.c.l.b16 %v292
      %v362 = vunpack.c.l.b16 %v293
      %v363 = vunpack.c.l.b16 %v294
      %v364 = vunpack.c.l.b16 %v295
      %v365 = vunpack.c.l.b16 %v296
      %v366 = vunpack.c.l.b16 %v297
      %v367 = vunpack.c.l.b16 %v298
      %v368 = vunpack.c.l.b16 %v299
      %v369 = vunpack.c.l.b16 %v300
      %v370 = vunpack.c.l.b16 %v301
      %v371 = vunpack.c.l.b16 %v302
      %v372 = vpack.c.b16 %v341, %v340
      %v373 = vpack.c.b16 %v343, %v342
      %v374 = vpack.c.b16 %v345, %v344
      %v375 = vpack.c.b16 %v347, %v346
      %v376 = vpack.c.b16 %v349, %v348
      %v377 = vpack.c.b16 %v351, %v350
      %v378 = vpack.c.b16 %v353, %v352
      %v379 = vpack.c.b16 %v355, %v354
      %v380 = vpack.c.b16 %v357, %v356
      %v381 = vpack.c.b16 %v359, %v358
      %v382 = vpack.c.b16 %v361, %v360
      %v383 = vpack.c.b16 %v363, %v362
      %v384 = vpack.c.b16 %v365, %v364
      %v385 = vpack.c.b16 %v367, %v366
      %v386 = vpack.c.b16 %v369, %v368
      %v387 = vpack.c.b16 %v371, %v370
      %v393 = vunpack.c.l.b16 %v303
      %v394 = vunpack.c.l.b16 %v304
      %v395 = vunpack.c.l.b16 %v305
      %v396 = vunpack.c.l.b16 %v306
      %v397 = vunpack.c.l.b16 %v307
      %v398 = vpack.c.b16 %v394, %v393
      %v399 = vpack.c.b16 %v396, %v395
      %v400 = vpack.c.b16 %v397, %v397
      %vm403 = vcmask 293888
      %v405 = vsel %vm403, %v372, 0
      %v408 = vsel %vm403, %v373, 0
      %v411 = vsel %vm403, %v374, 0
      %v414 = vsel %vm403, %v375, 0
      %v417 = vsel %vm403, %v376, 0
      %v420 = vsel %vm403, %v377, 0
      %v423 = vsel %vm403, %v378, 0
      %v426 = vsel %vm403, %v379, 0
      %v429 = vsel %vm403, %v380, 0
      %v432 = vsel %vm403, %v381, 0
      %v435 = vsel %vm403, %v382, 0
      %v438 = vsel %vm403, %v383, 0
      %v441 = vsel %vm403, %v384, 0
      %v444 = vsel %vm403, %v385, 0
      %v447 = vsel %vm403, %v386, 0
      %v450 = vsel %vm403, %v387, 0
      %vm452 = vcmask 1041408
      %v454 = vsel %vm452, %v400, 0
      %456 = vmatprep.subr.bf16.mxu0 0
      %457 = vmatpush1.bf16.msra.mxu0 %v398
      %458 = vmatprep.subr.bf16.mxu0 0
      %459 = vmatpush1.bf16.msra.mxu0 %v399
      %460 = vmatprep.subr.bf16.mxu0 0
      %461 = vmatpush1.bf16.msra.mxu0 %v454
      %462 = vmatprep.subr.bf16.mxu0 0
      %463 = vmatpush1.bf16.msra.mxu0 0
      %464 = vmatprep.subr.bf16.mxu0 0
      %465 = vmatpush1.bf16.msra.mxu0 0
      %466 = vmatprep.subr.bf16.mxu0 0
      %467 = vmatpush1.bf16.msra.mxu0 0
      %468 = vmatprep.subr.bf16.mxu0 0
      %469 = vmatpush1.bf16.msra.mxu0 0
      %470 = vmatprep.subr.bf16.mxu0 0
      %471 = vmatpush1.bf16.msra.mxu0 0
      %472 = vmatprep.subr.bf16.mxu0 0
      %473 = vmatpush1.bf16.msra.mxu0 0
      %474 = vmatprep.subr.bf16.mxu0 0
      %475 = vmatpush1.bf16.msra.mxu0 0
      %476 = vmatprep.subr.bf16.mxu0 0
      %477 = vmatpush1.bf16.msra.mxu0 0
      %478 = vmatprep.subr.bf16.mxu0 0
      %479 = vmatpush1.bf16.msra.mxu0 0
      %480 = vmatprep.subr.bf16.mxu0 0
      %481 = vmatpush1.bf16.msra.mxu0 0
      %482 = vmatprep.subr.bf16.mxu0 0
      %483 = vmatpush1.bf16.msra.mxu0 0
      %484 = vmatprep.subr.bf16.mxu0 0
      %485 = vmatpush1.bf16.msra.mxu0 0
      %486 = vmatprep.subr.bf16.mxu0 0
      %487 = vmatpush1.bf16.msra.mxu0 0
      %488 = vmatprep.mubr.bf16.mxu0 0
      %489 = vmatmul.mubr.bf16.gmra.mrb[0].mxu0 %v405
      %v490 = vpop.f32.mrb[0].mxu0
      %v491 = vadd.f32 0.0, %v490
      %v492 = vpop.f32.mrb[0].mxu0
      %v493 = vpop.f32.mrb[0].mxu0
      %v494 = vadd.f32 0.0, %v493
      %v495 = vpop.f32.mrb[0].mxu0
      %496 = vmatprep.mubr.bf16.mxu0 0
      %497 = vmatmul.mubr.bf16.gmra.mrb[0].mxu0 %v408
      %v498 = vpop.f32.mrb[0].mxu0
      %v499 = vadd.f32 0.0, %v498
      %v500 = vpop.f32.mrb[0].mxu0
      %v501 = vpop.f32.mrb[0].mxu0
      %v502 = vadd.f32 0.0, %v501
      %v503 = vpop.f32.mrb[0].mxu0
      %504 = vmatprep.mubr.bf16.mxu0 0
      %505 = vmatmul.mubr.bf16.gmra.mrb[0].mxu0 %v411
      %v506 = vpop.f32.mrb[0].mxu0
      %v507 = vadd.f32 0.0, %v506
      %v508 = vpop.f32.mrb[0].mxu0
      %v509 = vpop.f32.mrb[0].mxu0
      %v510 = vadd.f32 0.0, %v509
      %v511 = vpop.f32.mrb[0].mxu0
      %512 = vmatprep.mubr.bf16.mxu0 0
      %513 = vmatmul.mubr.bf16.gmra.mrb[0].mxu0 %v414
      %v514 = vpop.f32.mrb[0].mxu0
      %v515 = vadd.f32 0.0, %v514
      %v516 = vpop.f32.mrb[0].mxu0
      %v517 = vpop.f32.mrb[0].mxu0
      %v518 = vadd.f32 0.0, %v517
      %v519 = vpop.f32.mrb[0].mxu0
      %520 = vmatprep.mubr.bf16.mxu0 0
      %521 = vmatmul.mubr.bf16.gmra.mrb[0].mxu0 %v417
      %v522 = vpop.f32.mrb[0].mxu0
      %v523 = vadd.f32 0.0, %v522
      %v524 = vpop.f32.mrb[0].mxu0
      %v525 = vpop.f32.mrb[0].mxu0
      %v526 = vadd.f32 0.0, %v525
      %v527 = vpop.f32.mrb[0].mxu0
      %528 = vmatprep.mubr.bf16.mxu0 0
      %529 = vmatmul.mubr.bf16.gmra.mrb[0].mxu0 %v420
      %v530 = vpop.f32.mrb[0].mxu0
      %v531 = vadd.f32 0.0, %v530
      %v532 = vpop.f32.mrb[0].mxu0
      %v533 = vpop.f32.mrb[0].mxu0
      %v534 = vadd.f32 0.0, %v533
      %v535 = vpop.f32.mrb[0].mxu0
      %536 = vmatprep.mubr.bf16.mxu0 0
      %537 = vmatmul.mubr.bf16.gmra.mrb[0].mxu0 %v423
      %v538 = vpop.f32.mrb[0].mxu0
      %v539 = vadd.f32 0.0, %v538
      %v540 = vpop.f32.mrb[0].mxu0
      %v541 = vpop.f32.mrb[0].mxu0
      %v542 = vadd.f32 0.0, %v541
      %v543 = vpop.f32.mrb[0].mxu0
      %544 = vmatprep.mubr.bf16.mxu0 0
      %545 = vmatmul.mubr.bf16.gmra.mrb[0].mxu0 %v426
      %v546 = vpop.f32.mrb[0].mxu0
      %v547 = vadd.f32 0.0, %v546
      %v548 = vpop.f32.mrb[0].mxu0
      %v549 = vpop.f32.mrb[0].mxu0
      %v550 = vadd.f32 0.0, %v549
      %v551 = vpop.f32.mrb[0].mxu0
      %552 = vmatprep.mubr.bf16.mxu0 0
      %553 = vmatmul.mubr.bf16.gmra.mrb[0].mxu0 %v429
      %v554 = vpop.f32.mrb[0].mxu0
      %v555 = vadd.f32 0.0, %v554
      %v556 = vpop.f32.mrb[0].mxu0
      %v557 = vpop.f32.mrb[0].mxu0
      %v558 = vadd.f32 0.0, %v557
      %v559 = vpop.f32.mrb[0].mxu0
      %560 = vmatprep.mubr.bf16.mxu0 0
      %561 = vmatmul.mubr.bf16.gmra.mrb[0].mxu0 %v432
      %v562 = vpop.f32.mrb[0].mxu0
      %v563 = vadd.f32 0.0, %v562
      %v564 = vpop.f32.mrb[0].mxu0
      %v565 = vpop.f32.mrb[0].mxu0
      %v566 = vadd.f32 0.0, %v565
      %v567 = vpop.f32.mrb[0].mxu0
      %568 = vmatprep.mubr.bf16.mxu0 0
      %569 = vmatmul.mubr.bf16.gmra.mrb[0].mxu0 %v435
      %v570 = vpop.f32.mrb[0].mxu0
      %v571 = vadd.f32 0.0, %v570
      %v572 = vpop.f32.mrb[0].mxu0
      %v573 = vpop.f32.mrb[0].mxu0
      %v574 = vadd.f32 0.0, %v573
      %v575 = vpop.f32.mrb[0].mxu0
      %576 = vmatprep.mubr.bf16.mxu0 0
      %577 = vmatmul.mubr.bf16.gmra.mrb[0].mxu0 %v438
      %v578 = vpop.f32.mrb[0].mxu0
      %v579 = vadd.f32 0.0, %v578
      %v580 = vpop.f32.mrb[0].mxu0
      %v581 = vpop.f32.mrb[0].mxu0
      %v582 = vadd.f32 0.0, %v581
      %v583 = vpop.f32.mrb[0].mxu0
      %584 = vmatprep.mubr.bf16.mxu0 0
      %585 = vmatmul.mubr.bf16.gmra.mrb[0].mxu0 %v441
      %v586 = vpop.f32.mrb[0].mxu0
      %v587 = vadd.f32 0.0, %v586
      %v588 = vpop.f32.mrb[0].mxu0
      %v589 = vpop.f32.mrb[0].mxu0
      %v590 = vadd.f32 0.0, %v589
      %v591 = vpop.f32.mrb[0].mxu0
      %592 = vmatprep.mubr.bf16.mxu0 0
      %593 = vmatmul.mubr.bf16.gmra.mrb[0].mxu0 %v444
      %v594 = vpop.f32.mrb[0].mxu0
      %v595 = vadd.f32 0.0, %v594
      %v596 = vpop.f32.mrb[0].mxu0
      %v597 = vpop.f32.mrb[0].mxu0
      %v598 = vadd.f32 0.0, %v597
      %v599 = vpop.f32.mrb[0].mxu0
      %600 = vmatprep.mubr.bf16.mxu0 0
      %601 = vmatmul.mubr.bf16.gmra.mrb[0].mxu0 %v447
      %v602 = vpop.f32.mrb[0].mxu0
      %v603 = vadd.f32 0.0, %v602
      %v604 = vpop.f32.mrb[0].mxu0
      %v605 = vpop.f32.mrb[0].mxu0
      %v606 = vadd.f32 0.0, %v605
      %v607 = vpop.f32.mrb[0].mxu0
      %608 = vmatprep.mubr.bf16.mxu0 0
      %609 = vmatmul.mubr.bf16.gmra.mrb[0].mxu0 %v450
      %v610 = vpop.f32.mrb[0].mxu0
      %v611 = vadd.f32 0.0, %v610
      %v612 = vpop.f32.mrb[0].mxu0
      %v613 = vpop.f32.mrb[0].mxu0
      %v614 = vadd.f32 0.0, %v613
      %v615 = vpop.f32.mrb[0].mxu0
      %616 = vdwg.mxu0
      %v617 = vpack.c.bf16 %v494, %v491
      %v618 = vpack.c.bf16 %v502, %v499
      %v619 = vpack.c.bf16 %v510, %v507
      %v620 = vpack.c.bf16 %v518, %v515
      %v621 = vpack.c.bf16 %v526, %v523
      %v622 = vpack.c.bf16 %v534, %v531
      %v623 = vpack.c.bf16 %v542, %v539
      %v624 = vpack.c.bf16 %v550, %v547
      %v625 = vpack.c.bf16 %v558, %v555
      %v626 = vpack.c.bf16 %v566, %v563
      %v627 = vpack.c.bf16 %v574, %v571
      %v628 = vpack.c.bf16 %v582, %v579
      %v629 = vpack.c.bf16 %v590, %v587
      %v630 = vpack.c.bf16 %v598, %v595
      %v631 = vpack.c.bf16 %v606, %v603
      %v632 = vpack.c.bf16 %v614, %v611
      %v649 = vunpack.c.l.b16 %v617
      %v650 = vunpack.c.h.b16 %v617
      %v651 = vunpack.c.l.b16 %v618
      %v652 = vunpack.c.h.b16 %v618
      %v653 = vunpack.c.l.b16 %v619
      %v654 = vunpack.c.h.b16 %v619
      %v655 = vunpack.c.l.b16 %v620
      %v656 = vunpack.c.h.b16 %v620
      %v657 = vunpack.c.l.b16 %v621
      %v658 = vunpack.c.h.b16 %v621
      %v659 = vunpack.c.l.b16 %v622
      %v660 = vunpack.c.h.b16 %v622
      %v661 = vunpack.c.l.b16 %v623
      %v662 = vunpack.c.h.b16 %v623
      %v663 = vunpack.c.l.b16 %v624
      %v664 = vunpack.c.h.b16 %v624
      %v665 = vunpack.c.l.b16 %v625
      %v666 = vunpack.c.h.b16 %v625
      %v667 = vunpack.c.l.b16 %v626
      %v668 = vunpack.c.h.b16 %v626
      %v669 = vunpack.c.l.b16 %v627
      %v670 = vunpack.c.h.b16 %v627
      %v671 = vunpack.c.l.b16 %v628
      %v672 = vunpack.c.h.b16 %v628
      %v673 = vunpack.c.l.b16 %v629
      %v674 = vunpack.c.h.b16 %v629
      %v675 = vunpack.c.l.b16 %v630
      %v676 = vunpack.c.h.b16 %v630
      %v677 = vunpack.c.l.b16 %v631
      %v678 = vunpack.c.h.b16 %v631
      %v679 = vunpack.c.l.b16 %v632
      %v680 = vunpack.c.h.b16 %v632
      %v681 = vpack.c.b16 %v649, %v649
      %v682 = vpack.c.b16 %v650, %v650
      %v683 = vpack.c.b16 %v651, %v651
      %v684 = vpack.c.b16 %v652, %v652
      %v685 = vpack.c.b16 %v653, %v653
      %v686 = vpack.c.b16 %v654, %v654
      %v687 = vpack.c.b16 %v655, %v655
      %v688 = vpack.c.b16 %v656, %v656
      %v689 = vpack.c.b16 %v657, %v657
      %v690 = vpack.c.b16 %v658, %v658
      %v691 = vpack.c.b16 %v659, %v659
      %v692 = vpack.c.b16 %v660, %v660
      %v693 = vpack.c.b16 %v661, %v661
      %v694 = vpack.c.b16 %v662, %v662
      %v695 = vpack.c.b16 %v663, %v663
      %v696 = vpack.c.b16 %v664, %v664
      %v697 = vpack.c.b16 %v665, %v665
      %v698 = vpack.c.b16 %v666, %v666
      %v699 = vpack.c.b16 %v667, %v667
      %v700 = vpack.c.b16 %v668, %v668
      %v701 = vpack.c.b16 %v669, %v669
      %v702 = vpack.c.b16 %v670, %v670
      %v703 = vpack.c.b16 %v671, %v671
      %v704 = vpack.c.b16 %v672, %v672
      %v705 = vpack.c.b16 %v673, %v673
      %v706 = vpack.c.b16 %v674, %v674
      %v707 = vpack.c.b16 %v675, %v675
      %v708 = vpack.c.b16 %v676, %v676
      %v709 = vpack.c.b16 %v677, %v677
      %v710 = vpack.c.b16 %v678, %v678
      %v711 = vpack.c.b16 %v679, %v679
      %v712 = vpack.c.b16 %v680, %v680
      %vm745 = vcmask 257024
      %746 = vst.msk [vmem:[%s256] sm:$0xf] %vm745, %v681
      %747 = vst.msk [vmem:[%s256 + $0x4] sm:$0xf] %vm745, %v682
      %748 = vst.msk [vmem:[%s256 + $0x8] sm:$0xf] %vm745, %v683
      %749 = vst.msk [vmem:[%s256 + $0xc] sm:$0xf] %vm745, %v684
      %750 = vst.msk [vmem:[%s256 + $0x10] sm:$0xf] %vm745, %v685
      %751 = vst.msk [vmem:[%s256 + $0x14] sm:$0xf] %vm745, %v686
      %752 = vst.msk [vmem:[%s256 + $0x18] sm:$0xf] %vm745, %v687
      %753 = vst.msk [vmem:[%s256 + $0x1c] sm:$0xf] %vm745, %v688
      %754 = vst.msk [vmem:[%s256 + $0x20] sm:$0xf] %vm745, %v689
      %755 = vst.msk [vmem:[%s256 + $0x24] sm:$0xf] %vm745, %v690
      %756 = vst.msk [vmem:[%s256 + $0x28] sm:$0xf] %vm745, %v691
      %757 = vst.msk [vmem:[%s256 + $0x2c] sm:$0xf] %vm745, %v692
      %758 = vst.msk [vmem:[%s256 + $0x30] sm:$0xf] %vm745, %v693
      %759 = vst.msk [vmem:[%s256 + $0x34] sm:$0xf] %vm745, %v694
      %760 = vst.msk [vmem:[%s256 + $0x38] sm:$0xf] %vm745, %v695
      %761 = vst.msk [vmem:[%s256 + $0x3c] sm:$0xf] %vm745, %v696
      %762 = vst.msk [vmem:[%s256 + $0x40] sm:$0xf] %vm745, %v697
      %763 = vst.msk [vmem:[%s256 + $0x44] sm:$0xf] %vm745, %v698
      %764 = vst.msk [vmem:[%s256 + $0x48] sm:$0xf] %vm745, %v699
      %765 = vst.msk [vmem:[%s256 + $0x4c] sm:$0xf] %vm745, %v700
      %766 = vst.msk [vmem:[%s256 + $0x50] sm:$0xf] %vm745, %v701
      %767 = vst.msk [vmem:[%s256 + $0x54] sm:$0xf] %vm745, %v702
      %768 = vst.msk [vmem:[%s256 + $0x58] sm:$0xf] %vm745, %v703
      %769 = vst.msk [vmem:[%s256 + $0x5c] sm:$0xf] %vm745, %v704
      %770 = vst.msk [vmem:[%s256 + $0x60] sm:$0xf] %vm745, %v705
      %771 = vst.msk [vmem:[%s256 + $0x64] sm:$0xf] %vm745, %v706
      %772 = vst.msk [vmem:[%s256 + $0x68] sm:$0xf] %vm745, %v707
      %773 = vst.msk [vmem:[%s256 + $0x6c] sm:$0xf] %vm745, %v708
      %774 = vst.msk [vmem:[%s256 + $0x70] sm:$0xf] %vm745, %v709
      %775 = vst.msk [vmem:[%s256 + $0x74] sm:$0xf] %vm745, %v710
      %776 = vst.msk [vmem:[%s256 + $0x78] sm:$0xf] %vm745, %v711
      %777 = vst.msk [vmem:[%s256 + $0x7c] sm:$0xf] %vm745, %v712
      %vm778 = vcmask 261120
      %v779 = vsel %vm778, %v491, 0.0
      %v780 = vsel %vm778, %v494, 0.0
      %v781 = vadd.f32 %v779, %v780
      %v782 = vsel %vm778, %v499, 0.0
      %v783 = vadd.f32 %v781, %v782
      %v784 = vsel %vm778, %v502, 0.0
      %v785 = vadd.f32 %v783, %v784
      %v786 = vsel %vm778, %v507, 0.0
      %v787 = vadd.f32 %v785, %v786
      %v788 = vsel %vm778, %v510, 0.0
      %v789 = vadd.f32 %v787, %v788
      %v790 = vsel %vm778, %v515, 0.0
      %v791 = vadd.f32 %v789, %v790
      %v792 = vsel %vm778, %v518, 0.0
      %v793 = vadd.f32 %v791, %v792
      %v794 = vsel %vm778, %v523, 0.0
      %v795 = vadd.f32 %v793, %v794
      %v796 = vsel %vm778, %v526, 0.0
      %v797 = vadd.f32 %v795, %v796
      %v798 = vsel %vm778, %v531, 0.0
      %v799 = vadd.f32 %v797, %v798
      %v800 = vsel %vm778, %v534, 0.0
      %v801 = vadd.f32 %v799, %v800
      %v802 = vsel %vm778, %v539, 0.0
      %v803 = vadd.f32 %v801, %v802
      %v804 = vsel %vm778, %v542, 0.0
      %v805 = vadd.f32 %v803, %v804
      %v806 = vsel %vm778, %v547, 0.0
      %v807 = vadd.f32 %v805, %v806
      %v808 = vsel %vm778, %v550, 0.0
      %v809 = vadd.f32 %v807, %v808
      %v810 = vsel %vm778, %v555, 0.0
      %v811 = vadd.f32 %v809, %v810
      %v812 = vsel %vm778, %v558, 0.0
      %v813 = vadd.f32 %v811, %v812
      %v814 = vsel %vm778, %v563, 0.0
      %v815 = vadd.f32 %v813, %v814
      %v816 = vsel %vm778, %v566, 0.0
      %v817 = vadd.f32 %v815, %v816
      %v818 = vsel %vm778, %v571, 0.0
      %v819 = vadd.f32 %v817, %v818
      %v820 = vsel %vm778, %v574, 0.0
      %v821 = vadd.f32 %v819, %v820
      %v822 = vsel %vm778, %v579, 0.0
      %v823 = vadd.f32 %v821, %v822
      %v824 = vsel %vm778, %v582, 0.0
      %v825 = vadd.f32 %v823, %v824
      %v826 = vsel %vm778, %v587, 0.0
      %v827 = vadd.f32 %v825, %v826
      %v828 = vsel %vm778, %v590, 0.0
      %v829 = vadd.f32 %v827, %v828
      %v830 = vsel %vm778, %v595, 0.0
      %v831 = vadd.f32 %v829, %v830
      %v832 = vsel %vm778, %v598, 0.0
      %v833 = vadd.f32 %v831, %v832
      %v834 = vsel %vm778, %v603, 0.0
      %v835 = vadd.f32 %v833, %v834
      %v836 = vsel %vm778, %v606, 0.0
      %v837 = vadd.f32 %v835, %v836
      %v838 = vsel %vm778, %v611, 0.0
      %v839 = vadd.f32 %v837, %v838
      %v840 = vsel %vm778, %v614, 0.0
      %v841 = vadd.f32 %v839, %v840
      %v842 = vrot.slane %v841, 4
      %v843 = vadd.f32 %v841, %v842
      %v844 = vrot.slane %v843, 2
      %v845 = vadd.f32 %v843, %v844
      %v846 = vrot.slane %v845, 1
      %v847 = vadd.f32 %v845, %v846
      %vm848 = vcmask 253952
      %849 = vst.msk [vmem:[%s263] sm:$0x1] %vm848, %v847
      %v850 = vmul.f32 %v491, %v491
      %v851 = vmul.f32 %v494, %v494
      %v852 = vmul.f32 %v499, %v499
      %v853 = vmul.f32 %v502, %v502
      %v854 = vmul.f32 %v507, %v507
      %v855 = vmul.f32 %v510, %v510
      %v856 = vmul.f32 %v515, %v515
      %v857 = vmul.f32 %v518, %v518
      %v858 = vmul.f32 %v523, %v523
      %v859 = vmul.f32 %v526, %v526
      %v860 = vmul.f32 %v531, %v531
      %v861 = vmul.f32 %v534, %v534
      %v862 = vmul.f32 %v539, %v539
      %v863 = vmul.f32 %v542, %v542
      %v864 = vmul.f32 %v547, %v547
      %v865 = vmul.f32 %v550, %v550
      %v866 = vmul.f32 %v555, %v555
      %v867 = vmul.f32 %v558, %v558
      %v868 = vmul.f32 %v563, %v563
      %v869 = vmul.f32 %v566, %v566
      %v870 = vmul.f32 %v571, %v571
      %v871 = vmul.f32 %v574, %v574
      %v872 = vmul.f32 %v579, %v579
      %v873 = vmul.f32 %v582, %v582
      %v874 = vmul.f32 %v587, %v587
      %v875 = vmul.f32 %v590, %v590
      %v876 = vmul.f32 %v595, %v595
      %v877 = vmul.f32 %v598, %v598
      %v878 = vmul.f32 %v603, %v603
      %v879 = vmul.f32 %v606, %v606
      %v880 = vmul.f32 %v611, %v611
      %v881 = vmul.f32 %v614, %v614
      %v882 = vsel %vm778, %v850, 0.0
      %v883 = vsel %vm778, %v851, 0.0
      %v884 = vadd.f32 %v882, %v883
      %v885 = vsel %vm778, %v852, 0.0
      %v886 = vadd.f32 %v884, %v885
      %v887 = vsel %vm778, %v853, 0.0
      %v888 = vadd.f32 %v886, %v887
      %v889 = vsel %vm778, %v854, 0.0
      %v890 = vadd.f32 %v888, %v889
      %v891 = vsel %vm778, %v855, 0.0
      %v892 = vadd.f32 %v890, %v891
      %v893 = vsel %vm778, %v856, 0.0
      %v894 = vadd.f32 %v892, %v893
      %v895 = vsel %vm778, %v857, 0.0
      %v896 = vadd.f32 %v894, %v895
      %v897 = vsel %vm778, %v858, 0.0
      %v898 = vadd.f32 %v896, %v897
      %v899 = vsel %vm778, %v859, 0.0
      %v900 = vadd.f32 %v898, %v899
      %v901 = vsel %vm778, %v860, 0.0
      %v902 = vadd.f32 %v900, %v901
      %v903 = vsel %vm778, %v861, 0.0
      %v904 = vadd.f32 %v902, %v903
      %v905 = vsel %vm778, %v862, 0.0
      %v906 = vadd.f32 %v904, %v905
      %v907 = vsel %vm778, %v863, 0.0
      %v908 = vadd.f32 %v906, %v907
      %v909 = vsel %vm778, %v864, 0.0
      %v910 = vadd.f32 %v908, %v909
      %v911 = vsel %vm778, %v865, 0.0
      %v912 = vadd.f32 %v910, %v911
      %v913 = vsel %vm778, %v866, 0.0
      %v914 = vadd.f32 %v912, %v913
      %v915 = vsel %vm778, %v867, 0.0
      %v916 = vadd.f32 %v914, %v915
      %v917 = vsel %vm778, %v868, 0.0
      %v918 = vadd.f32 %v916, %v917
      %v919 = vsel %vm778, %v869, 0.0
      %v920 = vadd.f32 %v918, %v919
      %v921 = vsel %vm778, %v870, 0.0
      %v922 = vadd.f32 %v920, %v921
      %v923 = vsel %vm778, %v871, 0.0
      %v924 = vadd.f32 %v922, %v923
      %v925 = vsel %vm778, %v872, 0.0
      %v926 = vadd.f32 %v924, %v925
      %v927 = vsel %vm778, %v873, 0.0
      %v928 = vadd.f32 %v926, %v927
      %v929 = vsel %vm778, %v874, 0.0
      %v930 = vadd.f32 %v928, %v929
      %v931 = vsel %vm778, %v875, 0.0
      %v932 = vadd.f32 %v930, %v931
      %v933 = vsel %vm778, %v876, 0.0
      %v934 = vadd.f32 %v932, %v933
      %v935 = vsel %vm778, %v877, 0.0
      %v936 = vadd.f32 %v934, %v935
      %v937 = vsel %vm778, %v878, 0.0
      %v938 = vadd.f32 %v936, %v937
      %v939 = vsel %vm778, %v879, 0.0
      %v940 = vadd.f32 %v938, %v939
      %v941 = vsel %vm778, %v880, 0.0
      %v942 = vadd.f32 %v940, %v941
      %v943 = vsel %vm778, %v881, 0.0
      %v944 = vadd.f32 %v942, %v943
      %v945 = vrot.slane %v944, 4
      %v946 = vadd.f32 %v944, %v945
      %v947 = vrot.slane %v946, 2
      %v948 = vadd.f32 %v946, %v947
      %v949 = vrot.slane %v948, 1
      %v950 = vadd.f32 %v948, %v949
      %951 = vst.msk [vmem:[%s269] sm:$0x1] %vm848, %v950
      %s952 = smul.u32 32, %s21
      %p953 = scmp.lt.s32.totalorder %s20, 1
      %s954 = scalar_select %p953, %s20, 1
      %p955 = scmp.lt.s32.totalorder %s952, 31
      %s956 = scalar_select %p955, %s952, 31
      %s957 = smul.addr %s954, 32
      %s958 = sadd.s32 %s956, %s957
      %s959 = smul.addr %s958, 4
      %s960 = scalar_lea.vmem %s2, %s959
      %p961 = scmp.lt.s32.totalorder %s20, 1
      %s962 = scalar_select %p961, %s20, 1
      %p963 = scmp.lt.s32.totalorder %s21, 0
      %s964 = scalar_select %p963, %s21, 0
      %s965 = sadd.s32 %s964, %s962
      %s966 = scalar_lea.vmem %s3, %s965
      %p967 = scmp.lt.s32.totalorder %s20, 1
      %s968 = scalar_select %p967, %s20, 1
      %p969 = scmp.lt.s32.totalorder %s21, 0
      %s970 = scalar_select %p969, %s21, 0
      %s971 = sadd.s32 %s970, %s968
      %s972 = scalar_lea.vmem %s4, %s971
      // Predicated region
      $region29: #{conv_block_forward.5} parent=27 // pred_check
        %p973 = pneg %p97
      $region30: #{conv_block_forward.5} parent=27 // pred_check_branch
        %975 = sbr.rel (%p973) target = $region32
      $region31: #{conv_block_forward.5} parent=27 // pred_region
        %s976 = smul.u32 32, %s21
      $region32: #{conv_block_forward.5} parent=27 // pred_fallthru
        _
      // Predicated region
      $region33: #{conv_block_forward.5} parent=27 // pred_check
        %p977 = pneg %p125
      $region34: #{conv_block_forward.5} parent=27 // pred_check_branch
        %979 = sbr.rel (%p977) target = $region36
      $region35: #{conv_block_forward.5} parent=27 // pred_region
        _
      $region36: #{conv_block_forward.5} parent=27 // pred_fallthru
        _
      // Predicated region
      $region37: #{conv_block_forward.5} parent=27 // pred_check
        %p980 = pneg %p153
      $region38: #{conv_block_forward.5} parent=27 // pred_check_branch
        %982 = sbr.rel (%p980) target = $region40
      $region39: #{conv_block_forward.5} parent=27 // pred_region
        _
      $region40: #{conv_block_forward.5} parent=27 // pred_fallthru
        _
    $region28: #{conv_block_forward.5} parent=5 // pred_fallthru
      _
    %p983 = scmp.le.s32.totalorder 2, %s11
    // Predicated region
    $region41: #{conv_block_forward.5} parent=5 // pred_check
      %p984 = pneg %p983
    $region42: #{conv_block_forward.5} parent=5 // pred_check_branch
      %986 = sbr.rel (%p984) target = $region44
    $region43: #{conv_block_forward.5} parent=5 // pred_region
      %s987 = ssub.s32 %s11, 2
      // Predicated region
      $region45: #{conv_block_forward.5} parent=43 // pred_check
        %p988 = pneg %p103
      $region46: #{conv_block_forward.5} parent=43 // pred_check_branch
        %990 = sbr.rel (%p988) target = $region48
      $region47: #{conv_block_forward.5} parent=43 // pred_region
        %s991 = smul.u32 32, %s23
        %p992 = scmp.lt.s32.totalorder %s22, 1
        %s993 = scalar_select %p992, %s22, 1
        %p994 = scmp.lt.s32.totalorder %s991, 31
        %s995 = scalar_select %p994, %s991, 31
        %s996 = smul.addr %s993, 32
        %s997 = sadd.s32 %s995, %s996
        %s998 = smul.addr %s997, 4
        %s999 = scalar_lea.vmem %s2, %s998
      $region48: #{conv_block_forward.5} parent=43 // pred_fallthru
        _
      // Predicated region
      $region49: #{conv_block_forward.5} parent=43 // pred_check
        %p1000 = pneg %p131
      $region50: #{conv_block_forward.5} parent=43 // pred_check_branch
        %1002 = sbr.rel (%p1000) target = $region52
      $region51: #{conv_block_forward.5} parent=43 // pred_region
        %p1003 = scmp.lt.s32.totalorder %s22, 1
        %s1004 = scalar_select %p1003, %s22, 1
        %p1005 = scmp.lt.s32.totalorder %s23, 0
        %s1006 = scalar_select %p1005, %s23, 0
        %s1007 = sadd.s32 %s1006, %s1004
        %s1008 = scalar_lea.vmem %s3, %s1007
      $region52: #{conv_block_forward.5} parent=43 // pred_fallthru
        _
      // Predicated region
      $region53: #{conv_block_forward.5} parent=43 // pred_check
        %p1009 = pneg %p159
      $region54: #{conv_block_forward.5} parent=43 // pred_check_branch
        %1011 = sbr.rel (%p1009) target = $region56
      $region55: #{conv_block_forward.5} parent=43 // pred_region
        %p1012 = scmp.lt.s32.totalorder %s22, 1
        %s1013 = scalar_select %p1012, %s22, 1
        %p1014 = scmp.lt.s32.totalorder %s23, 0
        %s1015 = scalar_select %p1014, %s23, 0
        %s1016 = sadd.s32 %s1015, %s1013
        %s1017 = scalar_lea.vmem %s4, %s1016
      $region56: #{conv_block_forward.5} parent=43 // pred_fallthru
        _
    $region44: #{conv_block_forward.5} parent=5 // pred_fallthru
      _
  $region6: #{conv_block_forward.5} parent=0 // loop_footer
    %s15 = sadd.s32 1, %s11
  $region7: #{conv_block_forward.5} parent=0 // loop_footer_branch
    %10 = sbr.rel target = $region3
  $region8: #{conv_block_forward.5} parent=0 // loop_exit
    _

// kernel: conv_block_forward.7
$region0: #{conv_block_forward.7}
  #allocation0 [shape = 'u32[]', space=smem, size = 0x4, offset = 0x4, fixed_abs, tag = 'smem constant byte address 0x4 - core index']
  #allocation1 [shape = 'u32[144,128]{1,0:T(1,128)}', space=vmem, size = 0x12000, scoped, tag = 'internal scratch']
  %s0 = inlined_call_operand.vmem [shape: bf16[2,256,32], index: 0, kind: input, shape index: {}]
  %s1 = inlined_call_operand.vmem [shape: f32[1,1,32], index: 1, kind: input, shape index: {}]
  %s2 = inlined_call_operand.vmem [shape: f32[1,1,32], index: 2, kind: input, shape index: {}]
  %s3 = inlined_call_operand.vmem [shape: f32[2,1,32], index: 3, kind: output, shape index: {}]
  %s4 = sld [smem:[#allocation0]]
  $region45: #{conv_block_forward.7} parent=0
    _
  %s6 = ssub.s32 1, %s4
  %s7 = scalar_select 0, %s6, %s4
  loop: start=0, step=1, limit=4
  $region2: #{conv_block_forward.7} parent=0 // loop_pre_header
    _
  $region3: #{conv_block_forward.7} parent=0 // loop_header
    %s9 = sphi 0, %s13
    %p10 = scmp.ge.s32.totalorder %s9, 4
    %s16 = sphi 0, %s28
    %s17 = sphi 0, %s24
    %s18 = sphi 0, %s16
    %s19 = sphi 0, %s17
    %s20 = sphi 0, %s18
    %s21 = sphi 0, %s19
    %s33 = sphi 0, %s35
    %s36 = sphi 0, %s33
    %s37 = sphi 0, %s36
    %s53 = sphi 0, %s37
    %s57 = sphi 0, %s57
    %s59 = sphi 0, %s57
    %s60 = sphi 0, %s59
    %s74 = sphi 0, %s60
    %s78 = sphi 0, %s78
    %s80 = sphi 0, %s78
    %s81 = sphi 0, %s80
    %s95 = sphi 0, %s81
    %s103 = sphi 0, %s105
    %s106 = sphi 0, %s103
    %s107 = sphi 0, %s106
    %s123 = sphi 0, %s107
  $region4: #{conv_block_forward.7} parent=0 // loop_header_branch
    %12 = sbr.rel (%p10) target = $region8
  $region5: #{conv_block_forward.7} parent=0 // loop_body
    %s14 = ssub.s32 %s9, 1
    %s15 = ssub.s32 %s9, 2
    %s22 = sadd.s32 1, %s17
    %p23 = scmp.ge.s32.totalorder %s22, 1
    %s24 = scalar_select %p23, 0, %s22
    %s25 = sadd.s32 1, %s16
    %s26 = scalar_select %p23, %s25, %s16
    %p27 = scmp.ge.s32.totalorder %s26, 2
    %s28 = scalar_select %p27, 0, %s26
    %s29 = ssub.s32 %s16, %s28
    %s30 = ssub.s32 %s17, %s24
    %s31 = sor.u32 %s29, %s30
    %p32 = scmp.eq.s32.totalorder %s31, 0
    %s34 = sadd.s32 %s33, 1
    %s35 = scalar_select %p32, %s33, %s34
    %p38 = pneg %p32
    %p39 = scmp.eq.s32.totalorder %s9, 1
    %p40 = por %p38, %p39
    %p41 = scmp.ne.s32.totalorder %s33, %s36
    %p42 = scmp.eq.s32.totalorder %s9, 0
    %p43 = por %p41, %p42
    %p44 = scmp.ne.s32.totalorder %s33, %s36
    %p45 = scmp.eq.s32.totalorder %s14, 1
    %p46 = por %p44, %p45
    %p47 = scmp.ne.s32.totalorder %s36, %s37
    %p48 = scmp.eq.s32.totalorder %s14, 0
    %p49 = por %p47, %p48
    %p50 = scmp.ne.s32.totalorder %s36, %s37
    %p51 = scmp.eq.s32.totalorder %s15, 1
    %p52 = por %p50, %p51
    %p54 = scmp.ne.s32.totalorder %s37, %s53
    %p55 = scmp.eq.s32.totalorder %s15, 0
    %p56 = por %p54, %p55
    %s58 = sadd.s32 %s57, 1
    %p61 = scmp.eq.s32.totalorder %s9, 1
    %p62 = scmp.ne.s32.totalorder %s57, %s59
    %p63 = scmp.eq.s32.totalorder %s9, 0
    %p64 = por %p62, %p63
    %p65 = scmp.ne.s32.totalorder %s57, %s59
    %p66 = scmp.eq.s32.totalorder %s14, 1
    %p67 = por %p65, %p66
    %p68 = scmp.ne.s32.totalorder %s59, %s60
    %p69 = scmp.eq.s32.totalorder %s14, 0
    %p70 = por %p68, %p69
    %p71 = scmp.ne.s32.totalorder %s59, %s60
    %p72 = scmp.eq.s32.totalorder %s15, 1
    %p73 = por %p71, %p72
    %p75 = scmp.ne.s32.totalorder %s60, %s74
    %p76 = scmp.eq.s32.totalorder %s15, 0
    %p77 = por %p75, %p76
    %s79 = sadd.s32 %s78, 1
    %p82 = scmp.eq.s32.totalorder %s9, 1
    %p83 = scmp.ne.s32.totalorder %s78, %s80
    %p84 = scmp.eq.s32.totalorder %s9, 0
    %p85 = por %p83, %p84
    %p86 = scmp.ne.s32.totalorder %s78, %s80
    %p87 = scmp.eq.s32.totalorder %s14, 1
    %p88 = por %p86, %p87
    %p89 = scmp.ne.s32.totalorder %s80, %s81
    %p90 = scmp.eq.s32.totalorder %s14, 0
    %p91 = por %p89, %p90
    %p92 = scmp.ne.s32.totalorder %s80, %s81
    %p93 = scmp.eq.s32.totalorder %s15, 1
    %p94 = por %p92, %p93
    %p96 = scmp.ne.s32.totalorder %s81, %s95
    %p97 = scmp.eq.s32.totalorder %s15, 0
    %p98 = por %p96, %p97
    %s99 = ssub.s32 %s16, %s28
    %s100 = ssub.s32 %s17, %s24
    %s101 = sor.u32 %s99, %s100
    %p102 = scmp.eq.s32.totalorder %s101, 0
    %s104 = sadd.s32 %s103, 1
    %s105 = scalar_select %p102, %s103, %s104
    %p108 = pneg %p102
    %p109 = scmp.eq.s32.totalorder %s9, 1
    %p110 = por %p108, %p109
    %p111 = scmp.ne.s32.totalorder %s103, %s106
    %p112 = scmp.eq.s32.totalorder %s9, 0
    %p113 = por %p111, %p112
    %p114 = scmp.ne.s32.totalorder %s103, %s106
    %p115 = scmp.eq.s32.totalorder %s14, 1
    %p116 = por %p114, %p115
    %p117 = scmp.ne.s32.totalorder %s106, %s107
    %p118 = scmp.eq.s32.totalorder %s14, 0
    %p119 = por %p117, %p118
    %p120 = scmp.ne.s32.totalorder %s106, %s107
    %p121 = scmp.eq.s32.totalorder %s15, 1
    %p122 = por %p120, %p121
    %p124 = scmp.ne.s32.totalorder %s107, %s123
    %p125 = scmp.eq.s32.totalorder %s15, 0
    %p126 = por %p124, %p125
    %p127 = scmp.le.s32.totalorder 1, %s9
    %p128 = scmp.lt.s32.totalorder %s9, 3
    %p129 = pnand %p127, %p128
    %p130 = pneg %p129
    // Predicated region
    $region9: #{conv_block_forward.7} parent=5 // pred_check
      _
    $region10: #{conv_block_forward.7} parent=5 // pred_check_branch
      %132 = sbr.rel (%p129) target = $region12
    $region11: #{conv_block_forward.7} parent=5 // pred_region
      %s133 = ssub.s32 %s9, 1
      // Predicated region
      $region13: #{conv_block_forward.7} parent=11 // pred_check
        %p134 = pneg %p70
      $region14: #{conv_block_forward.7} parent=11 // pred_check_branch
        %136 = sbr.rel (%p134) target = $region16
      $region15: #{conv_block_forward.7} parent=11 // pred_region
        _
      $region16: #{conv_block_forward.7} parent=11 // pred_fallthru
        _
      // Predicated region
      $region17: #{conv_block_forward.7} parent=11 // pred_check
        %p137 = pneg %p91
      $region18: #{conv_block_forward.7} parent=11 // pred_check_branch
        %139 = sbr.rel (%p137) target = $region20
      $region19: #{conv_block_forward.7} parent=11 // pred_region
        _
      $region20: #{conv_block_forward.7} parent=11 // pred_fallthru
        _
    $region12: #{conv_block_forward.7} parent=5 // pred_fallthru
      _
    %p140 = scmp.lt.s32.totalorder %s9, 2
    // Predicated region
    $region21: #{conv_block_forward.7} parent=5 // pred_check
      %p141 = pneg %p140
    $region22: #{conv_block_forward.7} parent=5 // pred_check_branch
      %143 = sbr.rel (%p141) target = $region24
    $region23: #{conv_block_forward.7} parent=5 // pred_region
      // Predicated region
      $region25: #{conv_block_forward.7} parent=23 // pred_check
        %p144 = pneg %p43
      $region26: #{conv_block_forward.7} parent=23 // pred_check_branch
        %146 = sbr.rel (%p144) target = $region28
      $region27: #{conv_block_forward.7} parent=23 // pred_region
        %s147 = smul.u32 32, %s17
        %p148 = scmp.lt.s32.totalorder %s16, 1
        %s149 = scalar_select %p148, %s16, 1
        %p150 = scmp.lt.s32.totalorder %s147, 31
        %s151 = scalar_select %p150, %s147, 31
        %s152 = smul.addr %s149, 32
        %s153 = sadd.s32 %s151, %s152
        %s154 = smul.addr %s153, 4
        %s155 = scalar_lea.vmem %s0, %s154
        %s156 = smul.u32 32, %s17
      $region28: #{conv_block_forward.7} parent=23 // pred_fallthru
        _
    $region24: #{conv_block_forward.7} parent=5 // pred_fallthru
      _
    %p157 = scmp.le.s32.totalorder 1, %s9
    %p158 = scmp.lt.s32.totalorder %s9, 3
    %p159 = pnand %p157, %p158
    %p160 = pneg %p159
    // Predicated region
    $region29: #{conv_block_forward.7} parent=5 // pred_check
      _
    $region30: #{conv_block_forward.7} parent=5 // pred_check_branch
      %162 = sbr.rel (%p159) target = $region32
    $region31: #{conv_block_forward.7} parent=5 // pred_region
      %s163 = ssub.s32 %s9, 1
      %s164 = smul.u32 32, %s19
      %p165 = scmp.lt.s32.totalorder %s18, 1
      %s166 = scalar_select %p165, %s18, 1
      %p167 = scmp.lt.s32.totalorder %s164, 31
      %s168 = scalar_select %p167, %s164, 31
      %s169 = smul.addr %s166, 32
      %s170 = sadd.s32 %s168, %s169
      %s171 = smul.addr %s170, 4
      %s172 = scalar_lea.vmem %s0, %s171
      %p173 = pneg %p49
      %p174 = pneg %p46
      %p175 = pneg %p70
      %p176 = pneg %p67
      %p177 = pneg %p91
      %p178 = pneg %p88
      %p179 = pneg %p119
      %p180 = pneg %p116
      %p181 = scmp.lt.s32.totalorder %s18, 1
      %s182 = scalar_select %p181, %s18, 1
      %p183 = scmp.lt.s32.totalorder %s19, 0
      %s184 = scalar_select %p183, %s19, 0
      %s185 = sadd.s32 %s184, %s182
      %s186 = scalar_lea.vmem %s3, %s185
      %s187 = smul.u32 32, %s19
      %p188 = scmp.lt.s32.totalorder %s18, 1
      %s189 = scalar_select %p188, %s18, 1
      %p190 = scmp.lt.s32.totalorder %s187, 31
      %s191 = scalar_select %p190, %s187, 31
      %s192 = smul.addr %s189, 32
      %s193 = sadd.s32 %s191, %s192
      %s194 = smul.addr %s193, 4
      %s195 = scalar_lea.vmem %s0, %s194
      %s196 = smul.u32 32, %s19
      %p197 = scmp.lt.s32.totalorder %s18, 1
      %s198 = scalar_select %p197, %s18, 1
      %p199 = scmp.lt.s32.totalorder %s19, 0
      %s200 = scalar_select %p199, %s19, 0
      %s201 = sadd.s32 %s200, %s198
      %s202 = scalar_lea.vmem %s3, %s201
      %v203 = vld [vmem:[%s195] sm:$0xf]
      %v204 = vld [vmem:[%s195 + $0x4] sm:$0xf]
      %v205 = vld [vmem:[%s195 + $0x8] sm:$0xf]
      %v206 = vld [vmem:[%s195 + $0xc] sm:$0xf]
      %v207 = vld [vmem:[%s195 + $0x10] sm:$0xf]
      %v208 = vld [vmem:[%s195 + $0x14] sm:$0xf]
      %v209 = vld [vmem:[%s195 + $0x18] sm:$0xf]
      %v210 = vld [vmem:[%s195 + $0x1c] sm:$0xf]
      %v211 = vld [vmem:[%s195 + $0x20] sm:$0xf]
      %v212 = vld [vmem:[%s195 + $0x24] sm:$0xf]
      %v213 = vld [vmem:[%s195 + $0x28] sm:$0xf]
      %v214 = vld [vmem:[%s195 + $0x2c] sm:$0xf]
      %v215 = vld [vmem:[%s195 + $0x30] sm:$0xf]
      %v216 = vld [vmem:[%s195 + $0x34] sm:$0xf]
      %v217 = vld [vmem:[%s195 + $0x38] sm:$0xf]
      %v218 = vld [vmem:[%s195 + $0x3c] sm:$0xf]
      %v219 = vld [vmem:[%s195 + $0x40] sm:$0xf]
      %v220 = vld [vmem:[%s195 + $0x44] sm:$0xf]
      %v221 = vld [vmem:[%s195 + $0x48] sm:$0xf]
      %v222 = vld [vmem:[%s195 + $0x4c] sm:$0xf]
      %v223 = vld [vmem:[%s195 + $0x50] sm:$0xf]
      %v224 = vld [vmem:[%s195 + $0x54] sm:$0xf]
      %v225 = vld [vmem:[%s195 + $0x58] sm:$0xf]
      %v226 = vld [vmem:[%s195 + $0x5c] sm:$0xf]
      %v227 = vld [vmem:[%s195 + $0x60] sm:$0xf]
      %v228 = vld [vmem:[%s195 + $0x64] sm:$0xf]
      %v229 = vld [vmem:[%s195 + $0x68] sm:$0xf]
      %v230 = vld [vmem:[%s195 + $0x6c] sm:$0xf]
      %v231 = vld [vmem:[%s195 + $0x70] sm:$0xf]
      %v232 = vld [vmem:[%s195 + $0x74] sm:$0xf]
      %v233 = vld [vmem:[%s195 + $0x78] sm:$0xf]
      %v234 = vld [vmem:[%s195 + $0x7c] sm:$0xf]
      %v235 = vunpack.c.l.bf16 %v203
      %v236 = vunpack.c.l.bf16 %v204
      %v237 = vunpack.c.l.bf16 %v205
      %v238 = vunpack.c.l.bf16 %v206
      %v239 = vunpack.c.l.bf16 %v207
      %v240 = vunpack.c.l.bf16 %v208
      %v241 = vunpack.c.l.bf16 %v209
      %v242 = vunpack.c.l.bf16 %v210
      %v243 = vunpack.c.l.bf16 %v211
      %v244 = vunpack.c.l.bf16 %v212
      %v245 = vunpack.c.l.bf16 %v213
      %v246 = vunpack.c.l.bf16 %v214
      %v247 = vunpack.c.l.bf16 %v215
      %v248 = vunpack.c.l.bf16 %v216
      %v249 = vunpack.c.l.bf16 %v217
      %v250 = vunpack.c.l.bf16 %v218
      %v251 = vunpack.c.l.bf16 %v219
      %v252 = vunpack.c.l.bf16 %v220
      %v253 = vunpack.c.l.bf16 %v221
      %v254 = vunpack.c.l.bf16 %v222
      %v255 = vunpack.c.l.bf16 %v223
      %v256 = vunpack.c.l.bf16 %v224
      %v257 = vunpack.c.l.bf16 %v225
      %v258 = vunpack.c.l.bf16 %v226
      %v259 = vunpack.c.l.bf16 %v227
      %v260 = vunpack.c.l.bf16 %v228
      %v261 = vunpack.c.l.bf16 %v229
      %v262 = vunpack.c.l.bf16 %v230
      %v263 = vunpack.c.l.bf16 %v231
      %v264 = vunpack.c.l.bf16 %v232
      %v265 = vunpack.c.l.bf16 %v233
      %v266 = vunpack.c.l.bf16 %v234
      %v267 = vld [vmem:[%s1] sm:$0x1]
      %v269 = vlaneseq
      %v270 = vshrl.u32 %v269, 7
      %v271 = vsub.s32 0, %v270
      %v272 = vrot.slane %v267, %v271
      %v274 = vmul.f32 %v235, %v272
      %v275 = vmul.f32 %v236, %v272
      %v276 = vmul.f32 %v237, %v272
      %v277 = vmul.f32 %v238, %v272
      %v278 = vmul.f32 %v239, %v272
      %v279 = vmul.f32 %v240, %v272
      %v280 = vmul.f32 %v241, %v272
      %v281 = vmul.f32 %v242, %v272
      %v282 = vmul.f32 %v243, %v272
      %v283 = vmul.f32 %v244, %v272
      %v284 = vmul.f32 %v245, %v272
      %v285 = vmul.f32 %v246, %v272
      %v286 = vmul.f32 %v247, %v272
      %v287 = vmul.f32 %v248, %v272
      %v288 = vmul.f32 %v249, %v272
      %v289 = vmul.f32 %v250, %v272
      %v290 = vmul.f32 %v251, %v272
      %v291 = vmul.f32 %v252, %v272
      %v292 = vmul.f32 %v253, %v272
      %v293 = vmul.f32 %v254, %v272
      %v294 = vmul.f32 %v255, %v272
      %v295 = vmul.f32 %v256, %v272
      %v296 = vmul.f32 %v257, %v272
      %v297 = vmul.f32 %v258, %v272
      %v298 = vmul.f32 %v259, %v272
      %v299 = vmul.f32 %v260, %v272
      %v300 = vmul.f32 %v261, %v272
      %v301 = vmul.f32 %v262, %v272
      %v302 = vmul.f32 %v263, %v272
      %v303 = vmul.f32 %v264, %v272
      %v304 = vmul.f32 %v265, %v272
      %v305 = vmul.f32 %v266, %v272
      %v306 = vld [vmem:[%s2] sm:$0x1]
      %v308 = vlaneseq
      %v309 = vshrl.u32 %v308, 7
      %v310 = vsub.s32 0, %v309
      %v311 = vrot.slane %v306, %v310
      %v313 = vadd.f32 %v274, %v311
      %v314 = vadd.f32 %v275, %v311
      %v315 = vadd.f32 %v276, %v311
      %v316 = vadd.f32 %v277, %v311
      %v317 = vadd.f32 %v278, %v311
      %v318 = vadd.f32 %v279, %v311
      %v319 = vadd.f32 %v280, %v311
      %v320 = vadd.f32 %v281, %v311
      %v321 = vadd.f32 %v282, %v311
      %v322 = vadd.f32 %v283, %v311
      %v323 = vadd.f32 %v284, %v311
      %v324 = vadd.f32 %v285, %v311
      %v325 = vadd.f32 %v286, %v311
      %v326 = vadd.f32 %v287, %v311
      %v327 = vadd.f32 %v288, %v311
      %v328 = vadd.f32 %v289, %v311
      %v329 = vadd.f32 %v290, %v311
      %v330 = vadd.f32 %v291, %v311
      %v331 = vadd.f32 %v292, %v311
      %v332 = vadd.f32 %v293, %v311
      %v333 = vadd.f32 %v294, %v311
      %v334 = vadd.f32 %v295, %v311
      %v335 = vadd.f32 %v296, %v311
      %v336 = vadd.f32 %v297, %v311
      %v337 = vadd.f32 %v298, %v311
      %v338 = vadd.f32 %v299, %v311
      %v339 = vadd.f32 %v300, %v311
      %v340 = vadd.f32 %v301, %v311
      %v341 = vadd.f32 %v302, %v311
      %v342 = vadd.f32 %v303, %v311
      %v343 = vadd.f32 %v304, %v311
      %v344 = vadd.f32 %v305, %v311
      %v345 = vmax.f32 %v313, 0.0
      %v346 = vmax.f32 %v314, 0.0
      %v347 = vmax.f32 %v315, 0.0
      %v348 = vmax.f32 %v316, 0.0
      %v349 = vmax.f32 %v317, 0.0
      %v350 = vmax.f32 %v318, 0.0
      %v351 = vmax.f32 %v319, 0.0
      %v352 = vmax.f32 %v320, 0.0
      %v353 = vmax.f32 %v321, 0.0
      %v354 = vmax.f32 %v322, 0.0
      %v355 = vmax.f32 %v323, 0.0
      %v356 = vmax.f32 %v324, 0.0
      %v357 = vmax.f32 %v325, 0.0
      %v358 = vmax.f32 %v326, 0.0
      %v359 = vmax.f32 %v327, 0.0
      %v360 = vmax.f32 %v328, 0.0
      %v361 = vmax.f32 %v329, 0.0
      %v362 = vmax.f32 %v330, 0.0
      %v363 = vmax.f32 %v331, 0.0
      %v364 = vmax.f32 %v332, 0.0
      %v365 = vmax.f32 %v333, 0.0
      %v366 = vmax.f32 %v334, 0.0
      %v367 = vmax.f32 %v335, 0.0
      %v368 = vmax.f32 %v336, 0.0
      %v369 = vmax.f32 %v337, 0.0
      %v370 = vmax.f32 %v338, 0.0
      %v371 = vmax.f32 %v339, 0.0
      %v372 = vmax.f32 %v340, 0.0
      %v373 = vmax.f32 %v341, 0.0
      %v374 = vmax.f32 %v342, 0.0
      %v375 = vmax.f32 %v343, 0.0
      %v376 = vmax.f32 %v344, 0.0
      %vm377 = vcmask 261120
      %v378 = vsel %vm377, %v345, 0.0
      %v379 = vsel %vm377, %v346, 0.0
      %v380 = vadd.f32 %v378, %v379
      %v381 = vsel %vm377, %v347, 0.0
      %v382 = vadd.f32 %v380, %v381
      %v383 = vsel %vm377, %v348, 0.0
      %v384 = vadd.f32 %v382, %v383
      %v385 = vsel %vm377, %v349, 0.0
      %v386 = vadd.f32 %v384, %v385
      %v387 = vsel %vm377, %v350, 0.0
      %v388 = vadd.f32 %v386, %v387
      %v389 = vsel %vm377, %v351, 0.0
      %v390 = vadd.f32 %v388, %v389
      %v391 = vsel %vm377, %v352, 0.0
      %v392 = vadd.f32 %v390, %v391
      %v393 = vsel %vm377, %v353, 0.0
      %v394 = vadd.f32 %v392, %v393
      %v395 = vsel %vm377, %v354, 0.0
      %v396 = vadd.f32 %v394, %v395
      %v397 = vsel %vm377, %v355, 0.0
      %v398 = vadd.f32 %v396, %v397
      %v399 = vsel %vm377, %v356, 0.0
      %v400 = vadd.f32 %v398, %v399
      %v401 = vsel %vm377, %v357, 0.0
      %v402 = vadd.f32 %v400, %v401
      %v403 = vsel %vm377, %v358, 0.0
      %v404 = vadd.f32 %v402, %v403
      %v405 = vsel %vm377, %v359, 0.0
      %v406 = vadd.f32 %v404, %v405
      %v407 = vsel %vm377, %v360, 0.0
      %v408 = vadd.f32 %v406, %v407
      %v409 = vsel %vm377, %v361, 0.0
      %v410 = vadd.f32 %v408, %v409
      %v411 = vsel %vm377, %v362, 0.0
      %v412 = vadd.f32 %v410, %v411
      %v413 = vsel %vm377, %v363, 0.0
      %v414 = vadd.f32 %v412, %v413
      %v415 = vsel %vm377, %v364, 0.0
      %v416 = vadd.f32 %v414, %v415
      %v417 = vsel %vm377, %v365, 0.0
      %v418 = vadd.f32 %v416, %v417
      %v419 = vsel %vm377, %v366, 0.0
      %v420 = vadd.f32 %v418, %v419
      %v421 = vsel %vm377, %v367, 0.0
      %v422 = vadd.f32 %v420, %v421
      %v423 = vsel %vm377, %v368, 0.0
      %v424 = vadd.f32 %v422, %v423
      %v425 = vsel %vm377, %v369, 0.0
      %v426 = vadd.f32 %v424, %v425
      %v427 = vsel %vm377, %v370, 0.0
      %v428 = vadd.f32 %v426, %v427
      %v429 = vsel %vm377, %v371, 0.0
      %v430 = vadd.f32 %v428, %v429
      %v431 = vsel %vm377, %v372, 0.0
      %v432 = vadd.f32 %v430, %v431
      %v433 = vsel %vm377, %v373, 0.0
      %v434 = vadd.f32 %v432, %v433
      %v435 = vsel %vm377, %v374, 0.0
      %v436 = vadd.f32 %v434, %v435
      %v437 = vsel %vm377, %v375, 0.0
      %v438 = vadd.f32 %v436, %v437
      %v439 = vsel %vm377, %v376, 0.0
      %v440 = vadd.f32 %v438, %v439
      %v441 = vrot.slane %v440, 4
      %v442 = vadd.f32 %v440, %v441
      %v443 = vrot.slane %v442, 2
      %v444 = vadd.f32 %v442, %v443
      %v445 = vrot.slane %v444, 1
      %v446 = vadd.f32 %v444, %v445
      %vm447 = vcmask 253952
      %448 = vst.msk [vmem:[%s202] sm:$0x1] %vm447, %v446
      %p449 = scmp.lt.s32.totalorder %s18, 1
      %s450 = scalar_select %p449, %s18, 1
      %p451 = scmp.lt.s32.totalorder %s19, 0
      %s452 = scalar_select %p451, %s19, 0
      %s453 = sadd.s32 %s452, %s450
      %s454 = scalar_lea.vmem %s3, %s453
      // Predicated region
      $region33: #{conv_block_forward.7} parent=31 // pred_check
        %p455 = pneg %p116
      $region34: #{conv_block_forward.7} parent=31 // pred_check_branch
        %457 = sbr.rel (%p455) target = $region36
      $region35: #{conv_block_forward.7} parent=31 // pred_region
        _
      $region36: #{conv_block_forward.7} parent=31 // pred_fallthru
        _
    $region32: #{conv_block_forward.7} parent=5 // pred_fallthru
      _
    %p458 = scmp.le.s32.totalorder 2, %s9
    // Predicated region
    $region37: #{conv_block_forward.7} parent=5 // pred_check
      %p459 = pneg %p458
    $region38: #{conv_block_forward.7} parent=5 // pred_check_branch
      %461 = sbr.rel (%p459) target = $region40
    $region39: #{conv_block_forward.7} parent=5 // pred_region
      %s462 = ssub.s32 %s9, 2
      // Predicated region
      $region41: #{conv_block_forward.7} parent=39 // pred_check
        %p463 = pneg %p122
      $region42: #{conv_block_forward.7} parent=39 // pred_check_branch
        %465 = sbr.rel (%p463) target = $region44
      $region43: #{conv_block_forward.7} parent=39 // pred_region
        %p466 = scmp.lt.s32.totalorder %s20, 1
        %s467 = scalar_select %p466, %s20, 1
        %p468 = scmp.lt.s32.totalorder %s21, 0
        %s469 = scalar_select %p468, %s21, 0
        %s470 = sadd.s32 %s469, %s467
        %s471 = scalar_lea.vmem %s3, %s470
      $region44: #{conv_block_forward.7} parent=39 // pred_fallthru
        _
    $region40: #{conv_block_forward.7} parent=5 // pred_fallthru
      _
  $region6: #{conv_block_forward.7} parent=0 // loop_footer
    %s13 = sadd.s32 1, %s9
  $region7: #{conv_block_forward.7} parent=0 // loop_footer_branch
    %8 = sbr.rel target = $region3
  $region8: #{conv_block_forward.7} parent=0 // loop_exit
    _

// kernel: conv_block_forward.9
$region0: #{conv_block_forward.9}
  #allocation0 [shape = 'u32[]', space=smem, size = 0x4, offset = 0x4, fixed_abs, tag = 'smem constant byte address 0x4 - core index']
  #allocation1 [shape = 'u32[144,128]{1,0:T(1,128)}', space=vmem, size = 0x12000, scoped, tag = 'internal scratch']
  %s0 = inlined_call_operand.vmem [shape: bf16[2,256,32], index: 0, kind: input, shape index: {}]
  %s1 = inlined_call_operand.vmem [shape: f32[1,1,32], index: 1, kind: input, shape index: {}]
  %s2 = inlined_call_operand.vmem [shape: f32[1,1,32], index: 2, kind: input, shape index: {}]
  %s3 = inlined_call_operand.vmem [shape: f32[2,1,32], index: 3, kind: input, shape index: {}]
  %s4 = inlined_call_operand.hbm [shape: f32[2,256,32], index: 4, kind: output, shape index: {}]
  %s5 = sld [smem:[#allocation0]]
  $region49: #{conv_block_forward.9} parent=0
    _
  %s7 = ssub.s32 1, %s5
  %s8 = scalar_select 0, %s7, %s5
  $region1: #{conv_block_forward.9} parent=0
    #allocation2 [shape = 'u8[262144]{0}', space=vmem, size = 0x40000, scoped, tag = 'output window, operand 0']
    #allocation3 [shape = 's32[2]{0}', space=sflag, size = 0x8, scoped, tag = 'scoped memory for conv_block_forward.9']
    %9 = vsyncpa [#allocation3], 0
    %s10 = scalar_lea.sflag [#allocation3], 1
    %11 = vsyncpa %s10, 0
    loop: start=0, step=1, limit=4
    $region2: #{conv_block_forward.9} parent=1 // loop_pre_header
      _
    $region3: #{conv_block_forward.9} parent=1 // loop_header
      %s13 = sphi 0, %s17
      %p14 = scmp.ge.s32.totalorder %s13, 4
      %s20 = sphi 0, %s32
      %s21 = sphi 0, %s28
      %s22 = sphi 0, %s20
      %s23 = sphi 0, %s21
      %s24 = sphi 0, %s22
      %s25 = sphi 0, %s23
      %s37 = sphi 0, %s39
      %s40 = sphi 0, %s37
      %s41 = sphi 0, %s40
      %s57 = sphi 0, %s41
      %s61 = sphi 0, %s61
      %s63 = sphi 0, %s61
      %s64 = sphi 0, %s63
      %s78 = sphi 0, %s64
      %s82 = sphi 0, %s82
      %s84 = sphi 0, %s82
      %s85 = sphi 0, %s84
      %s99 = sphi 0, %s85
      %s105 = sphi 0, %s107
      %s108 = sphi 0, %s105
      %s109 = sphi 0, %s108
      %s125 = sphi 0, %s109
      %s133 = sphi 0, %s135
      %s136 = sphi 0, %s133
      %s137 = sphi 0, %s136
      %s153 = sphi 0, %s137
    $region4: #{conv_block_forward.9} parent=1 // loop_header_branch
      %16 = sbr.rel (%p14) target = $region8
    $region5: #{conv_block_forward.9} parent=1 // loop_body
      %s18 = ssub.s32 %s13, 1
      %s19 = ssub.s32 %s13, 2
      %s26 = sadd.s32 1, %s21
      %p27 = scmp.ge.s32.totalorder %s26, 1
      %s28 = scalar_select %p27, 0, %s26
      %s29 = sadd.s32 1, %s20
      %s30 = scalar_select %p27, %s29, %s20
      %p31 = scmp.ge.s32.totalorder %s30, 2
      %s32 = scalar_select %p31, 0, %s30
      %s33 = ssub.s32 %s20, %s32
      %s34 = ssub.s32 %s21, %s28
      %s35 = sor.u32 %s33, %s34
      %p36 = scmp.eq.s32.totalorder %s35, 0
      %s38 = sadd.s32 %s37, 1
      %s39 = scalar_select %p36, %s37, %s38
      %p42 = pneg %p36
      %p43 = scmp.eq.s32.totalorder %s13, 1
      %p44 = por %p42, %p43
      %p45 = scmp.ne.s32.totalorder %s37, %s40
      %p46 = scmp.eq.s32.totalorder %s13, 0
      %p47 = por %p45, %p46
      %p48 = scmp.ne.s32.totalorder %s37, %s40
      %p49 = scmp.eq.s32.totalorder %s18, 1
      %p50 = por %p48, %p49
      %p51 = scmp.ne.s32.totalorder %s40, %s41
      %p52 = scmp.eq.s32.totalorder %s18, 0
      %p53 = por %p51, %p52
      %p54 = scmp.ne.s32.totalorder %s40, %s41
      %p55 = scmp.eq.s32.totalorder %s19, 1
      %p56 = por %p54, %p55
      %p58 = scmp.ne.s32.totalorder %s41, %s57
      %p59 = scmp.eq.s32.totalorder %s19, 0
      %p60 = por %p58, %p59
      %s62 = sadd.s32 %s61, 1
      %p65 = scmp.eq.s32.totalorder %s13, 1
      %p66 = scmp.ne.s32.totalorder %s61, %s63
      %p67 = scmp.eq.s32.totalorder %s13, 0
      %p68 = por %p66, %p67
      %p69 = scmp.ne.s32.totalorder %s61, %s63
      %p70 = scmp.eq.s32.totalorder %s18, 1
      %p71 = por %p69, %p70
      %p72 = scmp.ne.s32.totalorder %s63, %s64
      %p73 = scmp.eq.s32.totalorder %s18, 0
      %p74 = por %p72, %p73
      %p75 = scmp.ne.s32.totalorder %s63, %s64
      %p76 = scmp.eq.s32.totalorder %s19, 1
      %p77 = por %p75, %p76
      %p79 = scmp.ne.s32.totalorder %s64, %s78
      %p80 = scmp.eq.s32.totalorder %s19, 0
      %p81 = por %p79, %p80
      %s83 = sadd.s32 %s82, 1
      %p86 = scmp.eq.s32.totalorder %s13, 1
      %p87 = scmp.ne.s32.totalorder %s82, %s84
      %p88 = scmp.eq.s32.totalorder %s13, 0
      %p89 = por %p87, %p88
      %p90 = scmp.ne.s32.totalorder %s82, %s84
      %p91 = scmp.eq.s32.totalorder %s18, 1
      %p92 = por %p90, %p91
      %p93 = scmp.ne.s32.totalorder %s84, %s85
      %p94 = scmp.eq.s32.totalorder %s18, 0
      %p95 = por %p93, %p94
      %p96 = scmp.ne.s32.totalorder %s84, %s85
      %p97 = scmp.eq.s32.totalorder %s19, 1
      %p98 = por %p96, %p97
      %p100 = scmp.ne.s32.totalorder %s85, %s99
      %p101 = scmp.eq.s32.totalorder %s19, 0
      %p102 = por %p100, %p101
      %s103 = ssub.s32 %s20, %s32
      %p104 = scmp.eq.s32.totalorder %s103, 0
      %s106 = sadd.s32 %s105, 1
      %s107 = scalar_select %p104, %s105, %s106
      %p110 = pneg %p104
      %p111 = scmp.eq.s32.totalorder %s13, 1
      %p112 = por %p110, %p111
      %p113 = scmp.ne.s32.totalorder %s105, %s108
      %p114 = scmp.eq.s32.totalorder %s13, 0
      %p115 = por %p113, %p114
      %p116 = scmp.ne.s32.totalorder %s105, %s108
      %p117 = scmp.eq.s32.totalorder %s18, 1
      %p118 = por %p116, %p117
      %p119 = scmp.ne.s32.totalorder %s108, %s109
      %p120 = scmp.eq.s32.totalorder %s18, 0
      %p121 = por %p119, %p120
      %p122 = scmp.ne.s32.totalorder %s108, %s109
      %p123 = scmp.eq.s32.totalorder %s19, 1
      %p124 = por %p122, %p123
      %p126 = scmp.ne.s32.totalorder %s109, %s125
      %p127 = scmp.eq.s32.totalorder %s19, 0
      %p128 = por %p126, %p127
      %s129 = ssub.s32 %s20, %s32
      %s130 = ssub.s32 %s21, %s28
      %s131 = sor.u32 %s129, %s130
      %p132 = scmp.eq.s32.totalorder %s131, 0
      %s134 = sadd.s32 %s133, 1
      %s135 = scalar_select %p132, %s133, %s134
      %p138 = pneg %p132
      %p139 = scmp.eq.s32.totalorder %s13, 1
      %p140 = por %p138, %p139
      %p141 = scmp.ne.s32.totalorder %s133, %s136
      %p142 = scmp.eq.s32.totalorder %s13, 0
      %p143 = por %p141, %p142
      %p144 = scmp.ne.s32.totalorder %s133, %s136
      %p145 = scmp.eq.s32.totalorder %s18, 1
      %p146 = por %p144, %p145
      %p147 = scmp.ne.s32.totalorder %s136, %s137
      %p148 = scmp.eq.s32.totalorder %s18, 0
      %p149 = por %p147, %p148
      %p150 = scmp.ne.s32.totalorder %s136, %s137
      %p151 = scmp.eq.s32.totalorder %s19, 1
      %p152 = por %p150, %p151
      %p154 = scmp.ne.s32.totalorder %s137, %s153
      %p155 = scmp.eq.s32.totalorder %s19, 0
      %p156 = por %p154, %p155
      %p157 = scmp.le.s32.totalorder 1, %s13
      %p158 = scmp.lt.s32.totalorder %s13, 3
      %p159 = pnand %p157, %p158
      %p160 = pneg %p159
      // Predicated region
      $region9: #{conv_block_forward.9} parent=5 // pred_check
        _
      $region10: #{conv_block_forward.9} parent=5 // pred_check_branch
        %162 = sbr.rel (%p159) target = $region12
      $region11: #{conv_block_forward.9} parent=5 // pred_region
        %s163 = ssub.s32 %s13, 1
        // Predicated region
        $region13: #{conv_block_forward.9} parent=11 // pred_check
          %p164 = pneg %p74
        $region14: #{conv_block_forward.9} parent=11 // pred_check_branch
          %166 = sbr.rel (%p164) target = $region16
        $region15: #{conv_block_forward.9} parent=11 // pred_region
          _
        $region16: #{conv_block_forward.9} parent=11 // pred_fallthru
          _
        // Predicated region
        $region17: #{conv_block_forward.9} parent=11 // pred_check
          %p167 = pneg %p95
        $region18: #{conv_block_forward.9} parent=11 // pred_check_branch
          %169 = sbr.rel (%p167) target = $region20
        $region19: #{conv_block_forward.9} parent=11 // pred_region
          _
        $region20: #{conv_block_forward.9} parent=11 // pred_fallthru
          _
      $region12: #{conv_block_forward.9} parent=5 // pred_fallthru
        _
      %p170 = scmp.lt.s32.totalorder %s13, 2
      // Predicated region
      $region21: #{conv_block_forward.9} parent=5 // pred_check
        %p171 = pneg %p170
      $region22: #{conv_block_forward.9} parent=5 // pred_check_branch
        %173 = sbr.rel (%p171) target = $region24
      $region23: #{conv_block_forward.9} parent=5 // pred_region
        // Predicated region
        $region25: #{conv_block_forward.9} parent=23 // pred_check
          %p174 = pneg %p47
        $region26: #{conv_block_forward.9} parent=23 // pred_check_branch
          %176 = sbr.rel (%p174) target = $region28
        $region27: #{conv_block_forward.9} parent=23 // pred_region
          %s177 = smul.u32 32, %s21
          %p178 = scmp.lt.s32.totalorder %s20, 1
          %s179 = scalar_select %p178, %s20, 1
          %p180 = scmp.lt.s32.totalorder %s177, 31
          %s181 = scalar_select %p180, %s177, 31
          %s182 = smul.addr %s179, 32
          %s183 = sadd.s32 %s181, %s182
          %s184 = smul.addr %s183, 4
          %s185 = scalar_lea.vmem %s0, %s184
          %s186 = smul.u32 32, %s21
        $region28: #{conv_block_forward.9} parent=23 // pred_fallthru
          _
        // Predicated region
        $region29: #{conv_block_forward.9} parent=23 // pred_check
          %p187 = pneg %p115
        $region30: #{conv_block_forward.9} parent=23 // pred_check_branch
          %189 = sbr.rel (%p187) target = $region32
        $region31: #{conv_block_forward.9} parent=23 // pred_region
          %p190 = scmp.lt.s32.totalorder %s20, 1
          %s191 = scalar_select %p190, %s20, 1
          %s192 = scalar_lea.vmem %s3, %s191
        $region32: #{conv_block_forward.9} parent=23 // pred_fallthru
          _
      $region24: #{conv_block_forward.9} parent=5 // pred_fallthru
        _
      %p193 = scmp.le.s32.totalorder 1, %s13
      %p194 = scmp.lt.s32.totalorder %s13, 3
      %p195 = pnand %p193, %p194
      %p196 = pneg %p195
      // Predicated region
      $region33: #{conv_block_forward.9} parent=5 // pred_check
        _
      $region34: #{conv_block_forward.9} parent=5 // pred_check_branch
        %198 = sbr.rel (%p195) target = $region36
      $region35: #{conv_block_forward.9} parent=5 // pred_region
        %s199 = ssub.s32 %s13, 1
        %s200 = smul.u32 32, %s23
        %p201 = scmp.lt.s32.totalorder %s22, 1
        %s202 = scalar_select %p201, %s22, 1
        %p203 = scmp.lt.s32.totalorder %s200, 31
        %s204 = scalar_select %p203, %s200, 31
        %s205 = smul.addr %s202, 32
        %s206 = sadd.s32 %s204, %s205
        %s207 = smul.addr %s206, 4
        %s208 = scalar_lea.vmem %s0, %s207
        %p209 = pneg %p53
        %p210 = pneg %p50
        %p211 = pneg %p74
        %p212 = pneg %p71
        %p213 = pneg %p95
        %p214 = pneg %p92
        %p215 = scmp.lt.s32.totalorder %s22, 1
        %s216 = scalar_select %p215, %s22, 1
        %s217 = scalar_lea.vmem %s3, %s216
        %p218 = pneg %p121
        %p219 = pneg %p118
        %p220 = pneg %p149
        %p221 = pneg %p146
        %s222 = sand.u32 %s136, 1
        %s223 = scalar_lea.sflag [#allocation3], %s222
        %s224 = sand.u32 %s136, 1
        %s225 = smul.addr %s224, 256
        %s226 = scalar_lea.vmem [#allocation2], %s225
        %s227 = smul.u32 32, %s23
        %p228 = scmp.lt.s32.totalorder %s22, 1
        %s229 = scalar_select %p228, %s22, 1
        %p230 = scmp.lt.s32.totalorder %s227, 31
        %s231 = scalar_select %p230, %s227, 31
        %s232 = smul.addr %s229, 32
        %s233 = sadd.s32 %s231, %s232
        %s234 = smul.addr %s233, 4
        %s235 = scalar_lea.vmem %s0, %s234
        %s236 = smul.u32 32, %s23
        %p237 = scmp.lt.s32.totalorder %s22, 1
        %s238 = scalar_select %p237, %s22, 1
        %s239 = scalar_lea.vmem %s3, %s238
        %s240 = smul.u32 32, %s23
        %v241 = vld [vmem:[%s235] sm:$0xf]
        %v242 = vld [vmem:[%s235 + $0x4] sm:$0xf]
        %v243 = vld [vmem:[%s235 + $0x8] sm:$0xf]
        %v244 = vld [vmem:[%s235 + $0xc] sm:$0xf]
        %v245 = vld [vmem:[%s235 + $0x10] sm:$0xf]
        %v246 = vld [vmem:[%s235 + $0x14] sm:$0xf]
        %v247 = vld [vmem:[%s235 + $0x18] sm:$0xf]
        %v248 = vld [vmem:[%s235 + $0x1c] sm:$0xf]
        %v249 = vld [vmem:[%s235 + $0x20] sm:$0xf]
        %v250 = vld [vmem:[%s235 + $0x24] sm:$0xf]
        %v251 = vld [vmem:[%s235 + $0x28] sm:$0xf]
        %v252 = vld [vmem:[%s235 + $0x2c] sm:$0xf]
        %v253 = vld [vmem:[%s235 + $0x30] sm:$0xf]
        %v254 = vld [vmem:[%s235 + $0x34] sm:$0xf]
        %v255 = vld [vmem:[%s235 + $0x38] sm:$0xf]
        %v256 = vld [vmem:[%s235 + $0x3c] sm:$0xf]
        %v257 = vld [vmem:[%s235 + $0x40] sm:$0xf]
        %v258 = vld [vmem:[%s235 + $0x44] sm:$0xf]
        %v259 = vld [vmem:[%s235 + $0x48] sm:$0xf]
        %v260 = vld [vmem:[%s235 + $0x4c] sm:$0xf]
        %v261 = vld [vmem:[%s235 + $0x50] sm:$0xf]
        %v262 = vld [vmem:[%s235 + $0x54] sm:$0xf]
        %v263 = vld [vmem:[%s235 + $0x58] sm:$0xf]
        %v264 = vld [vmem:[%s235 + $0x5c] sm:$0xf]
        %v265 = vld [vmem:[%s235 + $0x60] sm:$0xf]
        %v266 = vld [vmem:[%s235 + $0x64] sm:$0xf]
        %v267 = vld [vmem:[%s235 + $0x68] sm:$0xf]
        %v268 = vld [vmem:[%s235 + $0x6c] sm:$0xf]
        %v269 = vld [vmem:[%s235 + $0x70] sm:$0xf]
        %v270 = vld [vmem:[%s235 + $0x74] sm:$0xf]
        %v271 = vld [vmem:[%s235 + $0x78] sm:$0xf]
        %v272 = vld [vmem:[%s235 + $0x7c] sm:$0xf]
        %v273 = vunpack.c.l.bf16 %v241
        %v274 = vunpack.c.l.bf16 %v242
        %v275 = vunpack.c.l.bf16 %v243
        %v276 = vunpack.c.l.bf16 %v244
        %v277 = vunpack.c.l.bf16 %v245
        %v278 = vunpack.c.l.bf16 %v246
        %v279 = vunpack.c.l.bf16 %v247
        %v280 = vunpack.c.l.bf16 %v248
        %v281 = vunpack.c.l.bf16 %v249
        %v282 = vunpack.c.l.bf16 %v250
        %v283 = vunpack.c.l.bf16 %v251
        %v284 = vunpack.c.l.bf16 %v252
        %v285 = vunpack.c.l.bf16 %v253
        %v286 = vunpack.c.l.bf16 %v254
        %v287 = vunpack.c.l.bf16 %v255
        %v288 = vunpack.c.l.bf16 %v256
        %v289 = vunpack.c.l.bf16 %v257
        %v290 = vunpack.c.l.bf16 %v258
        %v291 = vunpack.c.l.bf16 %v259
        %v292 = vunpack.c.l.bf16 %v260
        %v293 = vunpack.c.l.bf16 %v261
        %v294 = vunpack.c.l.bf16 %v262
        %v295 = vunpack.c.l.bf16 %v263
        %v296 = vunpack.c.l.bf16 %v264
        %v297 = vunpack.c.l.bf16 %v265
        %v298 = vunpack.c.l.bf16 %v266
        %v299 = vunpack.c.l.bf16 %v267
        %v300 = vunpack.c.l.bf16 %v268
        %v301 = vunpack.c.l.bf16 %v269
        %v302 = vunpack.c.l.bf16 %v270
        %v303 = vunpack.c.l.bf16 %v271
        %v304 = vunpack.c.l.bf16 %v272
        %v305 = vld [vmem:[%s1] sm:$0x1]
        %v307 = vlaneseq
        %v308 = vshrl.u32 %v307, 7
        %v309 = vsub.s32 0, %v308
        %v310 = vrot.slane %v305, %v309
        %v312 = vmul.f32 %v273, %v310
        %v313 = vmul.f32 %v274, %v310
        %v314 = vmul.f32 %v275, %v310
        %v315 = vmul.f32 %v276, %v310
        %v316 = vmul.f32 %v277, %v310
        %v317 = vmul.f32 %v278, %v310
        %v318 = vmul.f32 %v279, %v310
        %v319 = vmul.f32 %v280, %v310
        %v320 = vmul.f32 %v281, %v310
        %v321 = vmul.f32 %v282, %v310
        %v322 = vmul.f32 %v283, %v310
        %v323 = vmul.f32 %v284, %v310
        %v324 = vmul.f32 %v285, %v310
        %v325 = vmul.f32 %v286, %v310
        %v326 = vmul.f32 %v287, %v310
        %v327 = vmul.f32 %v288, %v310
        %v328 = vmul.f32 %v289, %v310
        %v329 = vmul.f32 %v290, %v310
        %v330 = vmul.f32 %v291, %v310
        %v331 = vmul.f32 %v292, %v310
        %v332 = vmul.f32 %v293, %v310
        %v333 = vmul.f32 %v294, %v310
        %v334 = vmul.f32 %v295, %v310
        %v335 = vmul.f32 %v296, %v310
        %v336 = vmul.f32 %v297, %v310
        %v337 = vmul.f32 %v298, %v310
        %v338 = vmul.f32 %v299, %v310
        %v339 = vmul.f32 %v300, %v310
        %v340 = vmul.f32 %v301, %v310
        %v341 = vmul.f32 %v302, %v310
        %v342 = vmul.f32 %v303, %v310
        %v343 = vmul.f32 %v304, %v310
        %v344 = vld [vmem:[%s2] sm:$0x1]
        %v346 = vlaneseq
        %v347 = vshrl.u32 %v346, 7
        %v348 = vsub.s32 0, %v347
        %v349 = vrot.slane %v344, %v348
        %v351 = vadd.f32 %v312, %v349
        %v352 = vadd.f32 %v313, %v349
        %v353 = vadd.f32 %v314, %v349
        %v354 = vadd.f32 %v315, %v349
        %v355 = vadd.f32 %v316, %v349
        %v356 = vadd.f32 %v317, %v349
        %v357 = vadd.f32 %v318, %v349
        %v358 = vadd.f32 %v319, %v349
        %v359 = vadd.f32 %v320, %v349
        %v360 = vadd.f32 %v321, %v349
        %v361 = vadd.f32 %v322, %v349
        %v362 = vadd.f32 %v323, %v349
        %v363 = vadd.f32 %v324, %v349
        %v364 = vadd.f32 %v325, %v349
        %v365 = vadd.f32 %v326, %v349
        %v366 = vadd.f32 %v327, %v349
        %v367 = vadd.f32 %v328, %v349
        %v368 = vadd.f32 %v329, %v349
        %v369 = vadd.f32 %v330, %v349
        %v370 = vadd.f32 %v331, %v349
        %v371 = vadd.f32 %v332, %v349
        %v372 = vadd.f32 %v333, %v349
        %v373 = vadd.f32 %v334, %v349
        %v374 = vadd.f32 %v335, %v349
        %v375 = vadd.f32 %v336, %v349
        %v376 = vadd.f32 %v337, %v349
        %v377 = vadd.f32 %v338, %v349
        %v378 = vadd.f32 %v339, %v349
        %v379 = vadd.f32 %v340, %v349
        %v380 = vadd.f32 %v341, %v349
        %v381 = vadd.f32 %v342, %v349
        %v382 = vadd.f32 %v343, %v349
        %v383 = vmax.f32 %v351, 0.0
        %v384 = vmax.f32 %v352, 0.0
        %v385 = vmax.f32 %v353, 0.0
        %v386 = vmax.f32 %v354, 0.0
        %v387 = vmax.f32 %v355, 0.0
        %v388 = vmax.f32 %v356, 0.0
        %v389 = vmax.f32 %v357, 0.0
        %v390 = vmax.f32 %v358, 0.0
        %v391 = vmax.f32 %v359, 0.0
        %v392 = vmax.f32 %v360, 0.0
        %v393 = vmax.f32 %v361, 0.0
        %v394 = vmax.f32 %v362, 0.0
        %v395 = vmax.f32 %v363, 0.0
        %v396 = vmax.f32 %v364, 0.0
        %v397 = vmax.f32 %v365, 0.0
        %v398 = vmax.f32 %v366, 0.0
        %v399 = vmax.f32 %v367, 0.0
        %v400 = vmax.f32 %v368, 0.0
        %v401 = vmax.f32 %v369, 0.0
        %v402 = vmax.f32 %v370, 0.0
        %v403 = vmax.f32 %v371, 0.0
        %v404 = vmax.f32 %v372, 0.0
        %v405 = vmax.f32 %v373, 0.0
        %v406 = vmax.f32 %v374, 0.0
        %v407 = vmax.f32 %v375, 0.0
        %v408 = vmax.f32 %v376, 0.0
        %v409 = vmax.f32 %v377, 0.0
        %v410 = vmax.f32 %v378, 0.0
        %v411 = vmax.f32 %v379, 0.0
        %v412 = vmax.f32 %v380, 0.0
        %v413 = vmax.f32 %v381, 0.0
        %v414 = vmax.f32 %v382, 0.0
        %v415 = vld [vmem:[%s239] sm:$0x1]
        %v417 = vlaneseq
        %v418 = vshrl.u32 %v417, 7
        %v419 = vsub.s32 0, %v418
        %v420 = vrot.slane %v415, %v419
        %v422 = vmul.f32 %v383, %v420
        %v423 = vmul.f32 %v384, %v420
        %v424 = vmul.f32 %v385, %v420
        %v425 = vmul.f32 %v386, %v420
        %v426 = vmul.f32 %v387, %v420
        %v427 = vmul.f32 %v388, %v420
        %v428 = vmul.f32 %v389, %v420
        %v429 = vmul.f32 %v390, %v420
        %v430 = vmul.f32 %v391, %v420
        %v431 = vmul.f32 %v392, %v420
        %v432 = vmul.f32 %v393, %v420
        %v433 = vmul.f32 %v394, %v420
        %v434 = vmul.f32 %v395, %v420
        %v435 = vmul.f32 %v396, %v420
        %v436 = vmul.f32 %v397, %v420
        %v437 = vmul.f32 %v398, %v420
        %v438 = vmul.f32 %v399, %v420
        %v439 = vmul.f32 %v400, %v420
        %v440 = vmul.f32 %v401, %v420
        %v441 = vmul.f32 %v402, %v420
        %v442 = vmul.f32 %v403, %v420
        %v443 = vmul.f32 %v404, %v420
        %v444 = vmul.f32 %v405, %v420
        %v445 = vmul.f32 %v406, %v420
        %v446 = vmul.f32 %v407, %v420
        %v447 = vmul.f32 %v408, %v420
        %v448 = vmul.f32 %v409, %v420
        %v449 = vmul.f32 %v410, %v420
        %v450 = vmul.f32 %v411, %v420
        %v451 = vmul.f32 %v412, %v420
        %v452 = vmul.f32 %v413, %v420
        %v453 = vmul.f32 %v414, %v420
        %vm454 = vcmask 261120
        %455 = vst.msk [vmem:[%s226] sm:$0xff] %vm454, %v422
        %456 = vst.msk [vmem:[%s226 + $0x8] sm:$0xff] %vm454, %v423
        %457 = vst.msk [vmem:[%s226 + $0x10] sm:$0xff] %vm454, %v424
        %458 = vst.msk [vmem:[%s226 + $0x18] sm:$0xff] %vm454, %v425
        %459 = vst.msk [vmem:[%s226 + $0x20] sm:$0xff] %vm454, %v426
        %460 = vst.msk [vmem:[%s226 + $0x28] sm:$0xff] %vm454, %v427
        %461 = vst.msk [vmem:[%s226 + $0x30] sm:$0xff] %vm454, %v428
        %462 = vst.msk [vmem:[%s226 + $0x38] sm:$0xff] %vm454, %v429
        %463 = vst.msk [vmem:[%s226 + $0x40] sm:$0xff] %vm454, %v430
        %464 = vst.msk [vmem:[%s226 + $0x48] sm:$0xff] %vm454, %v431
        %465 = vst.msk [vmem:[%s226 + $0x50] sm:$0xff] %vm454, %v432
        %466 = vst.msk [vmem:[%s226 + $0x58] sm:$0xff] %vm454, %v433
        %467 = vst.msk [vmem:[%s226 + $0x60] sm:$0xff] %vm454, %v434
        %468 = vst.msk [vmem:[%s226 + $0x68] sm:$0xff] %vm454, %v435
        %469 = vst.msk [vmem:[%s226 + $0x70] sm:$0xff] %vm454, %v436
        %470 = vst.msk [vmem:[%s226 + $0x78] sm:$0xff] %vm454, %v437
        %471 = vst.msk [vmem:[%s226 + $0x80] sm:$0xff] %vm454, %v438
        %472 = vst.msk [vmem:[%s226 + $0x88] sm:$0xff] %vm454, %v439
        %473 = vst.msk [vmem:[%s226 + $0x90] sm:$0xff] %vm454, %v440
        %474 = vst.msk [vmem:[%s226 + $0x98] sm:$0xff] %vm454, %v441
        %475 = vst.msk [vmem:[%s226 + $0xa0] sm:$0xff] %vm454, %v442
        %476 = vst.msk [vmem:[%s226 + $0xa8] sm:$0xff] %vm454, %v443
        %477 = vst.msk [vmem:[%s226 + $0xb0] sm:$0xff] %vm454, %v444
        %478 = vst.msk [vmem:[%s226 + $0xb8] sm:$0xff] %vm454, %v445
        %479 = vst.msk [vmem:[%s226 + $0xc0] sm:$0xff] %vm454, %v446
        %480 = vst.msk [vmem:[%s226 + $0xc8] sm:$0xff] %vm454, %v447
        %481 = vst.msk [vmem:[%s226 + $0xd0] sm:$0xff] %vm454, %v448
        %482 = vst.msk [vmem:[%s226 + $0xd8] sm:$0xff] %vm454, %v449
        %483 = vst.msk [vmem:[%s226 + $0xe0] sm:$0xff] %vm454, %v450
        %484 = vst.msk [vmem:[%s226 + $0xe8] sm:$0xff] %vm454, %v451
        %485 = vst.msk [vmem:[%s226 + $0xf0] sm:$0xff] %vm454, %v452
        %486 = vst.msk [vmem:[%s226 + $0xf8] sm:$0xff] %vm454, %v453
        %s487 = sand.u32 %s136, 1
        %s488 = scalar_lea.sflag [#allocation3], %s487
        %s489 = sand.u32 %s136, 1
        %s490 = smul.addr %s489, 256
        %s491 = scalar_lea.vmem [#allocation2], %s490
        // Predicated region
        $region37: #{conv_block_forward.9} parent=35 // pred_check
          %p492 = pneg %p146
        $region38: #{conv_block_forward.9} parent=35 // pred_check_branch
          %494 = sbr.rel (%p492) target = $region40
        $region39: #{conv_block_forward.9} parent=35 // pred_region
          %s495 = smul.u32 32, %s23
          %s497 = ssub.s32 4096, 4096
          %498 = vsyncadd %s488, %s497
          %s499 = smul.addr %s22, 32
          %s500 = sadd.s32 %s495, %s499
          %s501 = smul.addr %s500, 128
          %s502 = scalar_lea.hbm %s4, %s501
          %s503 = sshll.u32 %s491, 4
          %s504 = int_to_ptr.vmem [resolvable:$true] %s503
          %509 = dma.vmem_to_hbm [thread:$0]  %s504, 4096, %s502, %s488, 128, 128, 8
        $region40: #{conv_block_forward.9} parent=35 // pred_fallthru
          _
      $region36: #{conv_block_forward.9} parent=5 // pred_fallthru
        _
      %p510 = scmp.le.s32.totalorder 2, %s13
      // Predicated region
      $region41: #{conv_block_forward.9} parent=5 // pred_check
        %p511 = pneg %p510
      $region42: #{conv_block_forward.9} parent=5 // pred_check_branch
        %513 = sbr.rel (%p511) target = $region44
      $region43: #{conv_block_forward.9} parent=5 // pred_region
        %s514 = ssub.s32 %s13, 2
        // Predicated region
        $region45: #{conv_block_forward.9} parent=43 // pred_check
          %p515 = pneg %p152
        $region46: #{conv_block_forward.9} parent=43 // pred_check_branch
          %517 = sbr.rel (%p515) target = $region48
        $region47: #{conv_block_forward.9} parent=43 // pred_region
          %s518 = sand.u32 %s137, 1
          %s519 = scalar_lea.sflag [#allocation3], %s518
          %s520 = sand.u32 %s137, 1
          %s521 = smul.addr %s520, 256
          %s522 = scalar_lea.vmem [#allocation2], %s521
          %523 = dma.done %s519, 4096
        $region48: #{conv_block_forward.9} parent=43 // pred_fallthru
          _
      $region44: #{conv_block_forward.9} parent=5 // pred_fallthru
        _
    $region6: #{conv_block_forward.9} parent=1 // loop_footer
      %s17 = sadd.s32 1, %s13
    $region7: #{conv_block_forward.9} parent=1 // loop_footer_branch
      %12 = sbr.rel target = $region3
    $region8: #{conv_block_forward.9} parent=1 // loop_exit
      _
    %524 = vsyncpa [#allocation3], 1
    %s525 = scalar_lea.sflag [#allocation3], 1
    %526 = vsyncpa %s525, 1

// kernel: conv_block_forward.8
$region0: #{conv_block_forward.8}
  #allocation0 [shape = 'u32[]', space=smem, size = 0x4, offset = 0x4, fixed_abs, tag = 'smem constant byte address 0x4 - core index']
  #allocation1 [shape = 'u32[144,128]{1,0:T(1,128)}', space=vmem, size = 0x12000, scoped, tag = 'internal scratch']
  %s0 = inlined_call_operand.vmem [shape: f32[2,1,32], index: 0, kind: input, shape index: {}]
  %s1 = inlined_call_operand.vmem [shape: f32[32,2], index: 1, kind: input, shape index: {}]
  %s2 = inlined_call_operand.vmem [shape: f32[2,32], index: 2, kind: input, shape index: {}]
  %s3 = inlined_call_operand.vmem [shape: f32[2,1,32], index: 3, kind: output, shape index: {}]
  %s4 = sld [smem:[#allocation0]]
  $region45: #{conv_block_forward.8} parent=0
    _
  %s6 = ssub.s32 1, %s4
  %s7 = scalar_select 0, %s6, %s4
  loop: start=0, step=1, limit=4
  $region2: #{conv_block_forward.8} parent=0 // loop_pre_header
    _
  $region3: #{conv_block_forward.8} parent=0 // loop_header
    %s9 = sphi 0, %s13
    %p10 = scmp.ge.s32.totalorder %s9, 4
    %s19 = sphi 0, %s21
    %s22 = sphi 0, %s19
    %s23 = sphi 0, %s22
    %s39 = sphi 0, %s23
    %s43 = sphi 0, %s43
    %s45 = sphi 0, %s43
    %s46 = sphi 0, %s45
    %s60 = sphi 0, %s46
    %s64 = sphi 0, %s64
    %s66 = sphi 0, %s64
    %s67 = sphi 0, %s66
    %s81 = sphi 0, %s67
    %s87 = sphi 0, %s89
    %s90 = sphi 0, %s87
    %s91 = sphi 0, %s90
    %s107 = sphi 0, %s91
  $region4: #{conv_block_forward.8} parent=0 // loop_header_branch
    %12 = sbr.rel (%p10) target = $region8
  $region5: #{conv_block_forward.8} parent=0 // loop_body
    %s14 = ssub.s32 %s9, 1
    %s15 = ssub.s32 %s9, 2
    %s16 = sadd.s32 %s9, 1
    %s17 = ssub.s32 %s9, %s16
    %p18 = scmp.eq.s32.totalorder %s17, 0
    %s20 = sadd.s32 %s19, 1
    %s21 = scalar_select %p18, %s19, %s20
    %p24 = pneg %p18
    %p25 = scmp.eq.s32.totalorder %s9, 1
    %p26 = por %p24, %p25
    %p27 = scmp.ne.s32.totalorder %s19, %s22
    %p28 = scmp.eq.s32.totalorder %s9, 0
    %p29 = por %p27, %p28
    %p30 = scmp.ne.s32.totalorder %s19, %s22
    %p31 = scmp.eq.s32.totalorder %s14, 1
    %p32 = por %p30, %p31
    %p33 = scmp.ne.s32.totalorder %s22, %s23
    %p34 = scmp.eq.s32.totalorder %s14, 0
    %p35 = por %p33, %p34
    %p36 = scmp.ne.s32.totalorder %s22, %s23
    %p37 = scmp.eq.s32.totalorder %s15, 1
    %p38 = por %p36, %p37
    %p40 = scmp.ne.s32.totalorder %s23, %s39
    %p41 = scmp.eq.s32.totalorder %s15, 0
    %p42 = por %p40, %p41
    %s44 = sadd.s32 %s43, 1
    %p47 = scmp.eq.s32.totalorder %s9, 1
    %p48 = scmp.ne.s32.totalorder %s43, %s45
    %p49 = scmp.eq.s32.totalorder %s9, 0
    %p50 = por %p48, %p49
    %p51 = scmp.ne.s32.totalorder %s43, %s45
    %p52 = scmp.eq.s32.totalorder %s14, 1
    %p53 = por %p51, %p52
    %p54 = scmp.ne.s32.totalorder %s45, %s46
    %p55 = scmp.eq.s32.totalorder %s14, 0
    %p56 = por %p54, %p55
    %p57 = scmp.ne.s32.totalorder %s45, %s46
    %p58 = scmp.eq.s32.totalorder %s15, 1
    %p59 = por %p57, %p58
    %p61 = scmp.ne.s32.totalorder %s46, %s60
    %p62 = scmp.eq.s32.totalorder %s15, 0
    %p63 = por %p61, %p62
    %s65 = sadd.s32 %s64, 1
    %p68 = scmp.eq.s32.totalorder %s9, 1
    %p69 = scmp.ne.s32.totalorder %s64, %s66
    %p70 = scmp.eq.s32.totalorder %s9, 0
    %p71 = por %p69, %p70
    %p72 = scmp.ne.s32.totalorder %s64, %s66
    %p73 = scmp.eq.s32.totalorder %s14, 1
    %p74 = por %p72, %p73
    %p75 = scmp.ne.s32.totalorder %s66, %s67
    %p76 = scmp.eq.s32.totalorder %s14, 0
    %p77 = por %p75, %p76
    %p78 = scmp.ne.s32.totalorder %s66, %s67
    %p79 = scmp.eq.s32.totalorder %s15, 1
    %p80 = por %p78, %p79
    %p82 = scmp.ne.s32.totalorder %s67, %s81
    %p83 = scmp.eq.s32.totalorder %s15, 0
    %p84 = por %p82, %p83
    %s85 = ssub.s32 %s9, %s16
    %p86 = scmp.eq.s32.totalorder %s85, 0
    %s88 = sadd.s32 %s87, 1
    %s89 = scalar_select %p86, %s87, %s88
    %p92 = pneg %p86
    %p93 = scmp.eq.s32.totalorder %s9, 1
    %p94 = por %p92, %p93
    %p95 = scmp.ne.s32.totalorder %s87, %s90
    %p96 = scmp.eq.s32.totalorder %s9, 0
    %p97 = por %p95, %p96
    %p98 = scmp.ne.s32.totalorder %s87, %s90
    %p99 = scmp.eq.s32.totalorder %s14, 1
    %p100 = por %p98, %p99
    %p101 = scmp.ne.s32.totalorder %s90, %s91
    %p102 = scmp.eq.s32.totalorder %s14, 0
    %p103 = por %p101, %p102
    %p104 = scmp.ne.s32.totalorder %s90, %s91
    %p105 = scmp.eq.s32.totalorder %s15, 1
    %p106 = por %p104, %p105
    %p108 = scmp.ne.s32.totalorder %s91, %s107
    %p109 = scmp.eq.s32.totalorder %s15, 0
    %p110 = por %p108, %p109
    %p111 = scmp.le.s32.totalorder 1, %s9
    %p112 = scmp.lt.s32.totalorder %s9, 3
    %p113 = pnand %p111, %p112
    %p114 = pneg %p113
    // Predicated region
    $region9: #{conv_block_forward.8} parent=5 // pred_check
      _
    $region10: #{conv_block_forward.8} parent=5 // pred_check_branch
      %116 = sbr.rel (%p113) target = $region12
    $region11: #{conv_block_forward.8} parent=5 // pred_region
      %s117 = ssub.s32 %s9, 1
      // Predicated region
      $region13: #{conv_block_forward.8} parent=11 // pred_check
        %p118 = pneg %p56
      $region14: #{conv_block_forward.8} parent=11 // pred_check_branch
        %120 = sbr.rel (%p118) target = $region16
      $region15: #{conv_block_forward.8} parent=11 // pred_region
        _
      $region16: #{conv_block_forward.8} parent=11 // pred_fallthru
        _
      // Predicated region
      $region17: #{conv_block_forward.8} parent=11 // pred_check
        %p121 = pneg %p77
      $region18: #{conv_block_forward.8} parent=11 // pred_check_branch
        %123 = sbr.rel (%p121) target = $region20
      $region19: #{conv_block_forward.8} parent=11 // pred_region
        _
      $region20: #{conv_block_forward.8} parent=11 // pred_fallthru
        _
    $region12: #{conv_block_forward.8} parent=5 // pred_fallthru
      _
    %p124 = scmp.lt.s32.totalorder %s9, 2
    // Predicated region
    $region21: #{conv_block_forward.8} parent=5 // pred_check
      %p125 = pneg %p124
    $region22: #{conv_block_forward.8} parent=5 // pred_check_branch
      %127 = sbr.rel (%p125) target = $region24
    $region23: #{conv_block_forward.8} parent=5 // pred_region
      // Predicated region
      $region25: #{conv_block_forward.8} parent=23 // pred_check
        %p128 = pneg %p29
      $region26: #{conv_block_forward.8} parent=23 // pred_check_branch
        %130 = sbr.rel (%p128) target = $region28
      $region27: #{conv_block_forward.8} parent=23 // pred_region
        %p131 = scmp.lt.s32.totalorder %s9, 1
        %s132 = scalar_select %p131, %s9, 1
        %s133 = scalar_lea.vmem %s0, %s132
      $region28: #{conv_block_forward.8} parent=23 // pred_fallthru
        _
    $region24: #{conv_block_forward.8} parent=5 // pred_fallthru
      _
    %p134 = scmp.le.s32.totalorder 1, %s9
    %p135 = scmp.lt.s32.totalorder %s9, 3
    %p136 = pnand %p134, %p135
    %p137 = pneg %p136
    // Predicated region
    $region29: #{conv_block_forward.8} parent=5 // pred_check
      _
    $region30: #{conv_block_forward.8} parent=5 // pred_check_branch
      %139 = sbr.rel (%p136) target = $region32
    $region31: #{conv_block_forward.8} parent=5 // pred_region
      %s140 = ssub.s32 %s9, 1
      %p141 = scmp.lt.s32.totalorder %s14, 1
      %s142 = scalar_select %p141, %s14, 1
      %s143 = scalar_lea.vmem %s0, %s142
      %p144 = pneg %p35
      %p145 = pneg %p32
      %p146 = pneg %p56
      %p147 = pneg %p53
      %p148 = pneg %p77
      %p149 = pneg %p74
      %p150 = pneg %p103
      %p151 = pneg %p100
      %p152 = scmp.lt.s32.totalorder %s14, 1
      %s153 = scalar_select %p152, %s14, 1
      %s154 = scalar_lea.vmem %s3, %s153
      %p155 = scmp.lt.s32.totalorder %s14, 1
      %s156 = scalar_select %p155, %s14, 1
      %s157 = scalar_lea.vmem %s0, %s156
      %p158 = scmp.lt.s32.totalorder %s14, 1
      %s159 = scalar_select %p158, %s14, 1
      %s160 = scalar_lea.vmem %s3, %s159
      %v161 = vld [vmem:[%s157] sm:$0x1]
      %v162 = vadd.f32 %v161, 0.0
      %v163 = vmul.f32 %v162, 0.00390625
      %v164 = vld [vmem:[%s1] sm:$0xff]
      %v165 = vld [vmem:[%s1 + $0x8] sm:$0xff]
      %v166 = vld [vmem:[%s1 + $0x10] sm:$0xff]
      %v167 = vld [vmem:[%s1 + $0x18] sm:$0xff]
      %vm168 = vcmask 261120
      %v170 = vsel %vm168, %v163, 0
      %172 = vmatprep.subr.mxu0 0.0
      %173 = vmatpush1.msra.mxu0 %v164
      %174 = vmatprep.subr.mxu0 0.0
      %175 = vmatpush1.msra.mxu0 %v165
      %176 = vmatprep.subr.mxu0 0.0
      %177 = vmatpush1.msra.mxu0 %v166
      %178 = vmatprep.subr.mxu0 0.0
      %179 = vmatpush1.msra.mxu0 %v167
      %180 = vmatprep.subr.mxu0 0.0
      %181 = vmatpush1.msra.mxu0 0.0
      %182 = vmatprep.subr.mxu0 0.0
      %183 = vmatpush1.msra.mxu0 0.0
      %184 = vmatprep.subr.mxu0 0.0
      %185 = vmatpush1.msra.mxu0 0.0
      %186 = vmatprep.subr.mxu0 0.0
      %187 = vmatpush1.msra.mxu0 0.0
      %188 = vmatprep.subr.mxu0 0.0
      %189 = vmatpush1.msra.mxu0 0.0
      %190 = vmatprep.subr.mxu0 0.0
      %191 = vmatpush1.msra.mxu0 0.0
      %192 = vmatprep.subr.mxu0 0.0
      %193 = vmatpush1.msra.mxu0 0.0
      %194 = vmatprep.subr.mxu0 0.0
      %195 = vmatpush1.msra.mxu0 0.0
      %196 = vmatprep.subr.mxu0 0.0
      %197 = vmatpush1.msra.mxu0 0.0
      %198 = vmatprep.subr.mxu0 0.0
      %199 = vmatpush1.msra.mxu0 0.0
      %200 = vmatprep.subr.mxu0 0.0
      %201 = vmatpush1.msra.mxu0 0.0
      %202 = vmatprep.subr.mxu0 0.0
      %203 = vmatpush1.msra.mxu0 0.0
      %204 = vmatprep.subr.mxu0 0.0
      %205 = vmatpush1.msra.mxu0 0.0
      %206 = vmatprep.subr.mxu0 0.0
      %207 = vmatpush1.msra.mxu0 0.0
      %208 = vmatprep.subr.mxu0 0.0
      %209 = vmatpush1.msra.mxu0 0.0
      %210 = vmatprep.subr.mxu0 0.0
      %211 = vmatpush1.msra.mxu0 0.0
      %212 = vmatprep.subr.mxu0 0.0
      %213 = vmatpush1.msra.mxu0 0.0
      %214 = vmatprep.subr.mxu0 0.0
      %215 = vmatpush1.msra.mxu0 0.0
      %216 = vmatprep.subr.mxu0 0.0
      %217 = vmatpush1.msra.mxu0 0.0
      %218 = vmatprep.subr.mxu0 0.0
      %219 = vmatpush1.msra.mxu0 0.0
      %220 = vmatprep.subr.mxu0 0.0
      %221 = vmatpush1.msra.mxu0 0.0
      %222 = vmatprep.subr.mxu0 0.0
      %223 = vmatpush1.msra.mxu0 0.0
      %224 = vmatprep.subr.mxu0 0.0
      %225 = vmatpush1.msra.mxu0 0.0
      %226 = vmatprep.subr.mxu0 0.0
      %227 = vmatpush1.msra.mxu0 0.0
      %228 = vmatprep.subr.mxu0 0.0
      %229 = vmatpush1.msra.mxu0 0.0
      %230 = vmatprep.subr.mxu0 0.0
      %231 = vmatpush1.msra.mxu0 0.0
      %232 = vmatprep.subr.mxu0 0.0
      %233 = vmatpush1.msra.mxu0 0.0
      %234 = vmatprep.subr.mxu0 0.0
      %235 = vmatpush1.msra.mxu0 0.0
      %236 = vmatprep.mubr.f32.mxu0 0.0
      %237 = vmatmul.mubr.f32.gmra.mrb[0].mxu0 %v170
      %v238 = vpop.f32.mrb[0].mxu0
      %v239 = vadd.f32 0.0, %v238
      %v240 = vpop.f32.mrb[0].mxu0
      %241 = vdwg.mxu0
      %v242 = vmax.f32 %v239, 0.0
      %v243 = vld [vmem:[%s2] sm:$0x3]
      %vm244 = vcmask 15360
      %v246 = vsel %vm244, %v242, 0
      %vm248 = vcmask 1041408
      %v250 = vsel %vm248, %v243, 0
      %252 = vmatprep.subr.mxu0 0.0
      %253 = vmatpush1.msra.mxu0 %v250
      %254 = vmatprep.subr.mxu0 0.0
      %255 = vmatpush1.msra.mxu0 0.0
      %256 = vmatprep.subr.mxu0 0.0
      %257 = vmatpush1.msra.mxu0 0.0
      %258 = vmatprep.subr.mxu0 0.0
      %259 = vmatpush1.msra.mxu0 0.0
      %260 = vmatprep.subr.mxu0 0.0
      %261 = vmatpush1.msra.mxu0 0.0
      %262 = vmatprep.subr.mxu0 0.0
      %263 = vmatpush1.msra.mxu0 0.0
      %264 = vmatprep.subr.mxu0 0.0
      %265 = vmatpush1.msra.mxu0 0.0
      %266 = vmatprep.subr.mxu0 0.0
      %267 = vmatpush1.msra.mxu0 0.0
      %268 = vmatprep.subr.mxu0 0.0
      %269 = vmatpush1.msra.mxu0 0.0
      %270 = vmatprep.subr.mxu0 0.0
      %271 = vmatpush1.msra.mxu0 0.0
      %272 = vmatprep.subr.mxu0 0.0
      %273 = vmatpush1.msra.mxu0 0.0
      %274 = vmatprep.subr.mxu0 0.0
      %275 = vmatpush1.msra.mxu0 0.0
      %276 = vmatprep.subr.mxu0 0.0
      %277 = vmatpush1.msra.mxu0 0.0
      %278 = vmatprep.subr.mxu0 0.0
      %279 = vmatpush1.msra.mxu0 0.0
      %280 = vmatprep.subr.mxu0 0.0
      %281 = vmatpush1.msra.mxu0 0.0
      %282 = vmatprep.subr.mxu0 0.0
      %283 = vmatpush1.msra.mxu0 0.0
      %284 = vmatprep.subr.mxu0 0.0
      %285 = vmatpush1.msra.mxu0 0.0
      %286 = vmatprep.subr.mxu0 0.0
      %287 = vmatpush1.msra.mxu0 0.0
      %288 = vmatprep.subr.mxu0 0.0
      %289 = vmatpush1.msra.mxu0 0.0
      %290 = vmatprep.subr.mxu0 0.0
      %291 = vmatpush1.msra.mxu0 0.0
      %292 = vmatprep.subr.mxu0 0.0
      %293 = vmatpush1.msra.mxu0 0.0
      %294 = vmatprep.subr.mxu0 0.0
      %295 = vmatpush1.msra.mxu0 0.0
      %296 = vmatprep.subr.mxu0 0.0
      %297 = vmatpush1.msra.mxu0 0.0
      %298 = vmatprep.subr.mxu0 0.0
      %299 = vmatpush1.msra.mxu0 0.0
      %300 = vmatprep.subr.mxu0 0.0
      %301 = vmatpush1.msra.mxu0 0.0
      %302 = vmatprep.subr.mxu0 0.0
      %303 = vmatpush1.msra.mxu0 0.0
      %304 = vmatprep.subr.mxu0 0.0
      %305 = vmatpush1.msra.mxu0 0.0
      %306 = vmatprep.subr.mxu0 0.0
      %307 = vmatpush1.msra.mxu0 0.0
      %308 = vmatprep.subr.mxu0 0.0
      %309 = vmatpush1.msra.mxu0 0.0
      %310 = vmatprep.subr.mxu0 0.0
      %311 = vmatpush1.msra.mxu0 0.0
      %312 = vmatprep.subr.mxu0 0.0
      %313 = vmatpush1.msra.mxu0 0.0
      %314 = vmatprep.subr.mxu0 0.0
      %315 = vmatpush1.msra.mxu0 0.0
      %316 = vmatprep.mubr.f32.mxu0 0.0
      %317 = vmatmul.mubr.f32.gmra.mrb[0].mxu0 %v246
      %v318 = vpop.f32.mrb[0].mxu0
      %v319 = vadd.f32 0.0, %v318
      %v320 = vpop.f32.mrb[0].mxu0
      %321 = vdwg.mxu0
      %v322 = vxor.u32 %v319, 2147483648
      %v323 = vmul.f32 %v322, 1.442695
      %v324 = vpow.pop %v323
      %v325 = vadd.f32 %v324, 1.0
      %v326 = vrcp.pop %v325
      %v327 = vmul.f32 1.0, %v326
      %vm328 = vcmask 253952
      %329 = vst.msk [vmem:[%s160] sm:$0x1] %vm328, %v327
      %p330 = scmp.lt.s32.totalorder %s14, 1
      %s331 = scalar_select %p330, %s14, 1
      %s332 = scalar_lea.vmem %s3, %s331
      // Predicated region
      $region33: #{conv_block_forward.8} parent=31 // pred_check
        %p333 = pneg %p100
      $region34: #{conv_block_forward.8} parent=31 // pred_check_branch
        %335 = sbr.rel (%p333) target = $region36
      $region35: #{conv_block_forward.8} parent=31 // pred_region
        _
      $region36: #{conv_block_forward.8} parent=31 // pred_fallthru
        _
    $region32: #{conv_block_forward.8} parent=5 // pred_fallthru
      _
    %p336 = scmp.le.s32.totalorder 2, %s9
    // Predicated region
    $region37: #{conv_block_forward.8} parent=5 // pred_check
      %p337 = pneg %p336
    $region38: #{conv_block_forward.8} parent=5 // pred_check_branch
      %339 = sbr.rel (%p337) target = $region40
    $region39: #{conv_block_forward.8} parent=5 // pred_region
      %s340 = ssub.s32 %s9, 2
      // Predicated region
      $region41: #{conv_block_forward.8} parent=39 // pred_check
        %p341 = pneg %p106
      $region42: #{conv_block_forward.8} parent=39 // pred_check_branch
        %343 = sbr.rel (%p341) target = $region44
      $region43: #{conv_block_forward.8} parent=39 // pred_region
        %p344 = scmp.lt.s32.totalorder %s15, 1
        %s345 = scalar_select %p344, %s15, 1
        %s346 = scalar_lea.vmem %s3, %s345
      $region44: #{conv_block_forward.8} parent=39 // pred_fallthru
        _
    $region40: #{conv_block_forward.8} parent=5 // pred_fallthru
      _
  $region6: #{conv_block_forward.8} parent=0 // loop_footer
    %s13 = sadd.s32 1, %s9
  $region7: #{conv_block_forward.8} parent=0 // loop_footer_branch
    %8 = sbr.rel target = $region3
  $region8: #{conv_block_forward.8} parent=0 // loop_exit
    _

</llo_original>
